<compile_context>
chip_gen: v7x
topology: tpu7x:2x2x1
jax: 0.10.0
libtpu: 0.0.40
codegen_flags: <defaults>
</compile_context>

<pallas_src>
import functools

import jax
import jax.numpy as jnp
from jax.experimental import pallas as pl
from jax.experimental.pallas import tpu as pltpu

START_SCALE = 4
NUM_SCALES = 5
L_WEIGHT = 0.32
DIV_FLOW = 0.05
# deterministic "parameters" of the module (buffer, not learned weights)
LOSS_WEIGHTS = jnp.asarray([L_WEIGHT / 2 ** s for s in range(NUM_SCALES)],
                           dtype=jnp.float32)


def _right_pool_mat(n_in, n_out, scale):
    """(n_in, n_out) block-selection matrix: M[r, c] = scale iff r // (n_in//n_out) == c."""
    k = n_in // n_out
    r = jax.lax.broadcasted_iota(jnp.int32, (n_in, n_out), 0)
    c = jax.lax.broadcasted_iota(jnp.int32, (n_in, n_out), 1)
    return jnp.where(r // k == c, jnp.float32(scale), jnp.float32(0.0))


def _fused_kernel(t_ref, *refs, num_scales, k0, coeffs):
    """All scales fused: strided-row H-pools, shared-matrix W-pools, weighted L1 sums."""
    preds = refs[:num_scales]
    mats = refs[num_scales:2 * num_scales]
    o_ref = refs[2 * num_scales]
    scratch = refs[2 * num_scales + 1]

    Gb, H, W = t_ref.shape
    Hs, Ws = H // k0, W // k0

    # ---- scale 0 ----
    # H-pool by k0: k0 sublane-strided reads of the target block (VPU adds only).
    v = t_ref[:, pl.ds(0, Hs, stride=k0), :].astype(jnp.float32)
    for j in range(1, k0):
        v = v + t_ref[:, pl.ds(j, Hs, stride=k0), :].astype(jnp.float32)
    # W-pool by k0: ONE lane-contraction matmul with the shared (W, Ws) matrix
    # (div_flow / k0**2 folded into the matrix values).
    pooled = jnp.dot(v.reshape(Gb * Hs, W), mats[0][...],
                     preferred_element_type=jnp.float32).reshape(Gb, Hs, Ws)

    parts = [jnp.float32(coeffs[0]) *
             jnp.sum(jnp.abs(preds[0][...].astype(jnp.float32) - pooled))]

    scratch[...] = pooled

    # ---- coarser scales: cascade of 2x2 pools on the in-VMEM pooled map ----
    h, w = Hs, Ws
    for i in range(1, num_scales):
        h2, w2 = h // 2, w // 2
        # H-pool by 2: two stride-2 sublane reads of the previous pooled map.
        a = (scratch[:, pl.ds(0, h2, stride=2), :w]
             + scratch[:, pl.ds(1, h2, stride=2), :w])
        # W-pool by 2: tiny shared-RHS matmul (the 0.25 averaging constant is
        # folded into the matrix; no broadcast, no batched einsum).
        p = jnp.dot(a.reshape(Gb * h2, w), mats[i][...],
                    preferred_element_type=jnp.float32).reshape(Gb, h2, w2)
        parts.append(jnp.float32(coeffs[i]) *
                     jnp.sum(jnp.abs(preds[i][...].astype(jnp.float32) - p)))
        if i + 1 < num_scales:
            scratch[:, :h2, :w2] = p
        h, w = h2, w2

    # Per-scale sums are independent; combine once at the end.
    total = parts[0]
    for s in parts[1:]:
        total = total + s

    # Lane-dense (8, 128) partial tile, one full unmasked store per grid step;
    # the scalar partial sum lands at element [0, 0], the rest is zero.
    r = jax.lax.broadcasted_iota(jnp.int32, (8, 128), 0)
    c = jax.lax.broadcasted_iota(jnp.int32, (8, 128), 1)
    o_ref[0] = jnp.where((r == 0) & (c == 0), total, jnp.float32(0.0))


def _vmem_capacity_bytes():
    try:
        return int(pltpu.get_tpu_info().vmem_capacity_bytes)
    except Exception:
        return 64 << 20          # conservative (v7x-sized) fallback


def _choose_block(G, H, W, pred_hw, t_itemsize, pred_itemsizes, mat_bytes, k0):
    """Pick gb (slices of G per grid step) from a real VMEM footprint budget."""
    cap = _vmem_capacity_bytes()
    # Leave headroom for the compiler's own scratch; don't claim all of VMEM.
    # v5e/v6e (128 MiB) -> 96 MiB, v7x (64 MiB) -> 48 MiB.
    vmem_limit = max(32 << 20, min(cap - (16 << 20), 96 << 20))
    budget = vmem_limit - (6 << 20)

    Hs, Ws = H // k0, W // k0
    per_gb = 2 * H * W * t_itemsize                                # dbl-buffered target
    per_gb += 2 * sum(h * w * it for (h, w), it in zip(pred_hw, pred_itemsizes))
    per_gb += 4 * (Hs * W            # f32 H-pooled intermediate
                   + 3 * Hs * Ws)    # pooled map + scratch + coarse temporaries
    fixed = 2 * mat_bytes + 2 * (8 * 128 * 4) + (1 << 20)

    gb = max(1, min(G, (budget - fixed) // max(per_gb, 1)))
    if G >= 2:
        gb = min(gb, G // 2)         # >= 2 grid blocks so v7x can use both cores
    gb = max(1, gb)
    while G % gb:
        gb -= 1
    return gb, G // gb, int(vmem_limit)


def multiscale_loss(flow_preds, flows):
    """flow_preds: list of (B, 2, H/k_i, W/k_i) arrays; flows: (B, n, 2, H, W)."""
    target = flows[:, 0]                                          # (B, 2, H, W)
    B, C, H, W = target.shape
    G = B * C
    num_scales = len(flow_preds)

    k_last = START_SCALE * 2 ** (num_scales - 1)
    assert H % k_last == 0 and W % k_last == 0, (
        "H, W must be divisible by startScale * 2**(numScales-1)")
    for i, p in enumerate(flow_preds):
        k = START_SCALE * 2 ** i
        assert p.shape == (B, C, H // k, W // k), (i, p.shape)

    # Keep native dtypes (no wrapper upcast); casts happen after load in-kernel.
    t = target.reshape(G, H, W)
    preds = [p.reshape(G, p.shape[-2], p.shape[-1]) for p in flow_preds]

    # Shared pooling matrices (averaging constants folded in); constant block
    # index -> DMA'd once, resident across the grid.
    Ws0 = W // START_SCALE
    mats = [_right_pool_mat(W, Ws0, DIV_FLOW / (START_SCALE * START_SCALE))]
    w = Ws0
    for _ in range(1, num_scales):
        mats.append(_right_pool_mat(w, w // 2, 0.25))
        w //= 2
    mat_bytes = sum(int(m.size) * m.dtype.itemsize for m in mats)

    gb, num_blocks, vmem_limit = _choose_block(
        G, H, W, [(p.shape[1], p.shape[2]) for p in preds],
        t.dtype.itemsize, [p.dtype.itemsize for p in preds], mat_bytes,
        START_SCALE)

    # Fold loss weight and mean divisor (compile-time constants) per scale.
    coeffs = tuple(float(L_WEIGHT / 2 ** i) / float(G * p.shape[1] * p.shape[2])
                   for i, p in enumerate(preds))

    kernel = functools.partial(_fused_kernel, num_scales=num_scales,
                               k0=START_SCALE, coeffs=coeffs)

    in_specs = [pl.BlockSpec((gb, H, W), lambda g: (g, 0, 0))]
    for p in preds:
        in_specs.append(pl.BlockSpec((gb, p.shape[1], p.shape[2]),
                                     lambda g: (g, 0, 0)))
    for m in mats:
        in_specs.append(pl.BlockSpec(m.shape, lambda g: (0, 0)))

    Hs0 = H // START_SCALE
    partial_tiles = pl.pallas_call(
        kernel,
        out_shape=jax.ShapeDtypeStruct((num_blocks, 8, 128), jnp.float32),
        grid=(num_blocks,),
        in_specs=in_specs,
        out_specs=pl.BlockSpec((1, 8, 128), lambda g: (g, 0, 0)),
        scratch_shapes=[pltpu.VMEM((gb, Hs0, Ws0), jnp.float32)],
        compiler_params=pltpu.CompilerParams(
            dimension_semantics=("parallel",),
            vmem_limit_bytes=vmem_limit),
    )(t, *preds, *mats)

    # TODO(synk): non-list branch of MultiScale.forward (single tensor, plain
    # L1 mean, no pooling) and the norm='L2' option are not exercised here.
    return jnp.sum(partial_tiles)


def _reference_loss(flow_preds, flows):
    target = DIV_FLOW * flows[:, 0]
    B, C, H, W = target.shape
    loss = jnp.float32(0.0)
    for i, pred in enumerate(flow_preds):
        k = START_SCALE * 2 ** i
        Hs, Ws = H // k, W // k
        pooled = target.reshape(B, C, Hs, k, Ws, k).mean(axis=(3, 5))
        loss = loss + LOSS_WEIGHTS[i] * jnp.mean(jnp.abs(pred - pooled))
    return loss


if __name__ == "__main__":
    key = jax.random.PRNGKey(0)
    B, C, H, W = 2, 2, 64, 64          # smallest H, W divisible by 4 * 2**4 = 64
    k_flows, *k_preds = jax.random.split(key, 1 + NUM_SCALES)

    flows = jax.random.normal(k_flows, (B, 1, C, H, W), dtype=jnp.float32)
    flow_preds = []
    for i in range(NUM_SCALES):
        ki = START_SCALE * 2 ** i
        flow_preds.append(
            jax.random.normal(k_preds[i], (B, C, H // ki, W // ki),
                              dtype=jnp.float32))

    out = multiscale_loss(flow_preds, flows)
    out = jax.block_until_ready(out)

    ref = _reference_loss(flow_preds, flows)
    assert jnp.allclose(out, ref, rtol=1e-4, atol=5e-5), (out, ref)
    print("KERNEL_OK")
</pallas_src>

<mosaic_0001>
module attributes {stable_mosaic.version = 11 : i64} {
  func.func @_fused_kernel(%arg0: i32, %arg1: memref<2x64x64xf32, #tpu.memory_space<vmem>>, %arg2: memref<2x16x16xf32, #tpu.memory_space<vmem>>, %arg3: memref<2x8x8xf32, #tpu.memory_space<vmem>>, %arg4: memref<2x4x4xf32, #tpu.memory_space<vmem>>, %arg5: memref<2x2x2xf32, #tpu.memory_space<vmem>>, %arg6: memref<2x1x1xf32, #tpu.memory_space<vmem>>, %arg7: memref<64x16xf32, #tpu.memory_space<vmem>>, %arg8: memref<16x8xf32, #tpu.memory_space<vmem>>, %arg9: memref<8x4xf32, #tpu.memory_space<vmem>>, %arg10: memref<4x2xf32, #tpu.memory_space<vmem>>, %arg11: memref<2x1xf32, #tpu.memory_space<vmem>>, %arg12: memref<1x8x128xf32, #tpu.memory_space<vmem>>, %arg13: memref<2x16x16xf32, #tpu.memory_space<vmem>>) attributes {dimension_semantics = [#tpu.dimension_semantics<parallel>], iteration_bounds = array<i64: 2>, scalar_prefetch = 0 : i64, scratch_operands = 1 : i64, tpu.core_type = #tpu.core_type<tc>, window_params = [{transform_indices = @transform_0, window_bounds = array<i64: 2, 64, 64>}, {transform_indices = @transform_1, window_bounds = array<i64: 2, 16, 16>}, {transform_indices = @transform_2, window_bounds = array<i64: 2, 8, 8>}, {transform_indices = @transform_3, window_bounds = array<i64: 2, 4, 4>}, {transform_indices = @transform_4, window_bounds = array<i64: 2, 2, 2>}, {transform_indices = @transform_5, window_bounds = array<i64: 2, 1, 1>}, {pipeline_mode = #tpu.pipeline_mode<synchronous>, transform_indices = @transform_6, window_bounds = array<i64: 64, 16>}, {pipeline_mode = #tpu.pipeline_mode<synchronous>, transform_indices = @transform_7, window_bounds = array<i64: 16, 8>}, {pipeline_mode = #tpu.pipeline_mode<synchronous>, transform_indices = @transform_8, window_bounds = array<i64: 8, 4>}, {pipeline_mode = #tpu.pipeline_mode<synchronous>, transform_indices = @transform_9, window_bounds = array<i64: 4, 2>}, {pipeline_mode = #tpu.pipeline_mode<synchronous>, transform_indices = @transform_10, window_bounds = array<i64: 2, 1>}, {transform_indices = @transform_11, window_bounds = array<i64: 1, 8, 128>}]} {
    %c0 = arith.constant 0 : index
    %c0_0 = arith.constant 0 : index
    %c0_1 = arith.constant 0 : index
    %0 = tpu.strided_load %arg1[%c0, %c0_0, %c0_1] {strides = array<i32: 1, 4, 1>} : memref<2x64x64xf32, #tpu.memory_space<vmem>>, vector<2x16x64xf32>
    %c0_2 = arith.constant 0 : index
    %c1 = arith.constant 1 : index
    %c0_3 = arith.constant 0 : index
    %1 = tpu.strided_load %arg1[%c0_2, %c1, %c0_3] {strides = array<i32: 1, 4, 1>} : memref<2x64x64xf32, #tpu.memory_space<vmem>>, vector<2x16x64xf32>
    %2 = arith.addf %0, %1 : vector<2x16x64xf32>
    %c0_4 = arith.constant 0 : index
    %c2 = arith.constant 2 : index
    %c0_5 = arith.constant 0 : index
    %3 = tpu.strided_load %arg1[%c0_4, %c2, %c0_5] {strides = array<i32: 1, 4, 1>} : memref<2x64x64xf32, #tpu.memory_space<vmem>>, vector<2x16x64xf32>
    %4 = arith.addf %2, %3 : vector<2x16x64xf32>
    %c0_6 = arith.constant 0 : index
    %c3 = arith.constant 3 : index
    %c0_7 = arith.constant 0 : index
    %5 = tpu.strided_load %arg1[%c0_6, %c3, %c0_7] {strides = array<i32: 1, 4, 1>} : memref<2x64x64xf32, #tpu.memory_space<vmem>>, vector<2x16x64xf32>
    %6 = arith.addf %4, %5 : vector<2x16x64xf32>
    %7 = vector.shape_cast %6 : vector<2x16x64xf32> to vector<32x64xf32>
    %c0_8 = arith.constant 0 : index
    %c0_9 = arith.constant 0 : index
    %8 = vector.load %arg7[%c0_8, %c0_9] : memref<64x16xf32, #tpu.memory_space<vmem>>, vector<64x16xf32>
    %cst = arith.constant dense<0.000000e+00> : vector<32x16xf32>
    %9 = tpu.matmul %7, %8, %cst {dimension_numbers = #tpu.dot_dimension_numbers<[1], [0], [0], [1], [0, 0, 1, 1], [], []>} : vector<32x64xf32>, vector<64x16xf32>, vector<32x16xf32> -> vector<32x16xf32>
    %10 = vector.shape_cast %9 : vector<32x16xf32> to vector<2x16x16xf32>
    %c0_10 = arith.constant 0 : index
    %c0_11 = arith.constant 0 : index
    %c0_12 = arith.constant 0 : index
    %11 = vector.load %arg2[%c0_10, %c0_11, %c0_12] : memref<2x16x16xf32, #tpu.memory_space<vmem>>, vector<2x16x16xf32>
    %12 = arith.subf %11, %10 : vector<2x16x16xf32>
    %13 = math.absf %12 : vector<2x16x16xf32>
    %14 = vector.shape_cast %13 : vector<2x16x16xf32> to vector<1x2x16x16xf32>
    %cst_13 = arith.constant dense<0.000000e+00> : vector<1xf32>
    %15 = vector.multi_reduction <add>, %14, %cst_13 [1, 2, 3] : vector<1x2x16x16xf32> to vector<1xf32>
    %16 = vector.shape_cast %15 : vector<1xf32> to vector<1x1x1x1xf32>
    %17 = vector.extract %16[0, 0, 0, 0] : f32 from vector<1x1x1x1xf32>
    %cst_14 = arith.constant 3.125000e-04 : f32
    %18 = arith.mulf %cst_14, %17 : f32
    %c0_15 = arith.constant 0 : index
    %c0_16 = arith.constant 0 : index
    %c0_17 = arith.constant 0 : index
    %19 = vector.load %arg13[%c0_15, %c0_16, %c0_17] : memref<2x16x16xf32, #tpu.memory_space<vmem>>, vector<2x16x16xf32>
    tpu.vector_store %arg13[%c0_15, %c0_16, %c0_17], %10 {strides = array<i32>} : memref<2x16x16xf32, #tpu.memory_space<vmem>>, vector<2x16x16xf32>,
    %c0_18 = arith.constant 0 : index
    %c0_19 = arith.constant 0 : index
    %c0_20 = arith.constant 0 : index
    %20 = tpu.strided_load %arg13[%c0_18, %c0_19, %c0_20] {strides = array<i32: 1, 2, 1>} : memref<2x16x16xf32, #tpu.memory_space<vmem>>, vector<2x8x16xf32>
    %c0_21 = arith.constant 0 : index
    %c1_22 = arith.constant 1 : index
    %c0_23 = arith.constant 0 : index
    %21 = tpu.strided_load %arg13[%c0_21, %c1_22, %c0_23] {strides = array<i32: 1, 2, 1>} : memref<2x16x16xf32, #tpu.memory_space<vmem>>, vector<2x8x16xf32>
    %22 = arith.addf %20, %21 : vector<2x8x16xf32>
    %23 = vector.shape_cast %22 : vector<2x8x16xf32> to vector<16x16xf32>
    %c0_24 = arith.constant 0 : index
    %c0_25 = arith.constant 0 : index
    %24 = vector.load %arg8[%c0_24, %c0_25] : memref<16x8xf32, #tpu.memory_space<vmem>>, vector<16x8xf32>
    %cst_26 = arith.constant dense<0.000000e+00> : vector<16x8xf32>
    %25 = tpu.matmul %23, %24, %cst_26 {dimension_numbers = #tpu.dot_dimension_numbers<[1], [0], [0], [1], [0, 0, 1, 1], [], []>} : vector<16x16xf32>, vector<16x8xf32>, vector<16x8xf32> -> vector<16x8xf32>
    %26 = vector.shape_cast %25 : vector<16x8xf32> to vector<2x8x8xf32>
    %c0_27 = arith.constant 0 : index
    %c0_28 = arith.constant 0 : index
    %c0_29 = arith.constant 0 : index
    %27 = vector.load %arg3[%c0_27, %c0_28, %c0_29] : memref<2x8x8xf32, #tpu.memory_space<vmem>>, vector<2x8x8xf32>
    %28 = arith.subf %27, %26 : vector<2x8x8xf32>
    %29 = math.absf %28 : vector<2x8x8xf32>
    %30 = vector.shape_cast %29 : vector<2x8x8xf32> to vector<1x2x8x8xf32>
    %cst_30 = arith.constant dense<0.000000e+00> : vector<1xf32>
    %31 = vector.multi_reduction <add>, %30, %cst_30 [1, 2, 3] : vector<1x2x8x8xf32> to vector<1xf32>
    %32 = vector.shape_cast %31 : vector<1xf32> to vector<1x1x1x1xf32>
    %33 = vector.extract %32[0, 0, 0, 0] : f32 from vector<1x1x1x1xf32>
    %cst_31 = arith.constant 6.250000e-04 : f32
    %34 = arith.mulf %cst_31, %33 : f32
    %c0_32 = arith.constant 0 : index
    %c0_33 = arith.constant 0 : index
    %c0_34 = arith.constant 0 : index
    %35 = vector.load %arg13[%c0_32, %c0_33, %c0_34] : memref<2x16x16xf32, #tpu.memory_space<vmem>>, vector<2x8x8xf32>
    tpu.vector_store %arg13[%c0_32, %c0_33, %c0_34], %26 {strides = array<i32>} : memref<2x16x16xf32, #tpu.memory_space<vmem>>, vector<2x8x8xf32>,
    %c0_35 = arith.constant 0 : index
    %c0_36 = arith.constant 0 : index
    %c0_37 = arith.constant 0 : index
    %36 = tpu.strided_load %arg13[%c0_35, %c0_36, %c0_37] {strides = array<i32: 1, 2, 1>} : memref<2x16x16xf32, #tpu.memory_space<vmem>>, vector<2x4x8xf32>
    %c0_38 = arith.constant 0 : index
    %c1_39 = arith.constant 1 : index
    %c0_40 = arith.constant 0 : index
    %37 = tpu.strided_load %arg13[%c0_38, %c1_39, %c0_40] {strides = array<i32: 1, 2, 1>} : memref<2x16x16xf32, #tpu.memory_space<vmem>>, vector<2x4x8xf32>
    %38 = arith.addf %36, %37 : vector<2x4x8xf32>
    %39 = vector.shape_cast %38 : vector<2x4x8xf32> to vector<8x8xf32>
    %c0_41 = arith.constant 0 : index
    %c0_42 = arith.constant 0 : index
    %40 = vector.load %arg9[%c0_41, %c0_42] : memref<8x4xf32, #tpu.memory_space<vmem>>, vector<8x4xf32>
    %cst_43 = arith.constant dense<0.000000e+00> : vector<8x4xf32>
    %41 = tpu.matmul %39, %40, %cst_43 {dimension_numbers = #tpu.dot_dimension_numbers<[1], [0], [0], [1], [0, 0, 1, 1], [], []>} : vector<8x8xf32>, vector<8x4xf32>, vector<8x4xf32> -> vector<8x4xf32>
    %42 = vector.shape_cast %41 : vector<8x4xf32> to vector<2x4x4xf32>
    %c0_44 = arith.constant 0 : index
    %c0_45 = arith.constant 0 : index
    %c0_46 = arith.constant 0 : index
    %43 = vector.load %arg4[%c0_44, %c0_45, %c0_46] : memref<2x4x4xf32, #tpu.memory_space<vmem>>, vector<2x4x4xf32>
    %44 = arith.subf %43, %42 : vector<2x4x4xf32>
    %45 = math.absf %44 : vector<2x4x4xf32>
    %46 = vector.shape_cast %45 : vector<2x4x4xf32> to vector<1x2x4x4xf32>
    %cst_47 = arith.constant dense<0.000000e+00> : vector<1xf32>
    %47 = vector.multi_reduction <add>, %46, %cst_47 [1, 2, 3] : vector<1x2x4x4xf32> to vector<1xf32>
    %48 = vector.shape_cast %47 : vector<1xf32> to vector<1x1x1x1xf32>
    %49 = vector.extract %48[0, 0, 0, 0] : f32 from vector<1x1x1x1xf32>
    %cst_48 = arith.constant 1.250000e-03 : f32
    %50 = arith.mulf %cst_48, %49 : f32
    %c0_49 = arith.constant 0 : index
    %c0_50 = arith.constant 0 : index
    %c0_51 = arith.constant 0 : index
    %51 = vector.load %arg13[%c0_49, %c0_50, %c0_51] : memref<2x16x16xf32, #tpu.memory_space<vmem>>, vector<2x4x4xf32>
    tpu.vector_store %arg13[%c0_49, %c0_50, %c0_51], %42 {strides = array<i32>} : memref<2x16x16xf32, #tpu.memory_space<vmem>>, vector<2x4x4xf32>,
    %c0_52 = arith.constant 0 : index
    %c0_53 = arith.constant 0 : index
    %c0_54 = arith.constant 0 : index
    %52 = tpu.strided_load %arg13[%c0_52, %c0_53, %c0_54] {strides = array<i32: 1, 2, 1>} : memref<2x16x16xf32, #tpu.memory_space<vmem>>, vector<2x2x4xf32>
    %c0_55 = arith.constant 0 : index
    %c1_56 = arith.constant 1 : index
    %c0_57 = arith.constant 0 : index
    %53 = tpu.strided_load %arg13[%c0_55, %c1_56, %c0_57] {strides = array<i32: 1, 2, 1>} : memref<2x16x16xf32, #tpu.memory_space<vmem>>, vector<2x2x4xf32>
    %54 = arith.addf %52, %53 : vector<2x2x4xf32>
    %55 = vector.shape_cast %54 : vector<2x2x4xf32> to vector<4x4xf32>
    %c0_58 = arith.constant 0 : index
    %c0_59 = arith.constant 0 : index
    %56 = vector.load %arg10[%c0_58, %c0_59] : memref<4x2xf32, #tpu.memory_space<vmem>>, vector<4x2xf32>
    %cst_60 = arith.constant dense<0.000000e+00> : vector<4x2xf32>
    %57 = tpu.matmul %55, %56, %cst_60 {dimension_numbers = #tpu.dot_dimension_numbers<[1], [0], [0], [1], [0, 0, 1, 1], [], []>} : vector<4x4xf32>, vector<4x2xf32>, vector<4x2xf32> -> vector<4x2xf32>
    %58 = vector.shape_cast %57 : vector<4x2xf32> to vector<2x2x2xf32>
    %c0_61 = arith.constant 0 : index
    %c0_62 = arith.constant 0 : index
    %c0_63 = arith.constant 0 : index
    %59 = vector.load %arg5[%c0_61, %c0_62, %c0_63] : memref<2x2x2xf32, #tpu.memory_space<vmem>>, vector<2x2x2xf32>
    %60 = arith.subf %59, %58 : vector<2x2x2xf32>
    %61 = math.absf %60 : vector<2x2x2xf32>
    %62 = vector.shape_cast %61 : vector<2x2x2xf32> to vector<1x2x2x2xf32>
    %cst_64 = arith.constant dense<0.000000e+00> : vector<1xf32>
    %63 = vector.multi_reduction <add>, %62, %cst_64 [1, 2, 3] : vector<1x2x2x2xf32> to vector<1xf32>
    %64 = vector.shape_cast %63 : vector<1xf32> to vector<1x1x1x1xf32>
    %65 = vector.extract %64[0, 0, 0, 0] : f32 from vector<1x1x1x1xf32>
    %cst_65 = arith.constant 2.500000e-03 : f32
    %66 = arith.mulf %cst_65, %65 : f32
    %c0_66 = arith.constant 0 : index
    %c0_67 = arith.constant 0 : index
    %c0_68 = arith.constant 0 : index
    %67 = vector.load %arg13[%c0_66, %c0_67, %c0_68] : memref<2x16x16xf32, #tpu.memory_space<vmem>>, vector<2x2x2xf32>
    tpu.vector_store %arg13[%c0_66, %c0_67, %c0_68], %58 {strides = array<i32>} : memref<2x16x16xf32, #tpu.memory_space<vmem>>, vector<2x2x2xf32>,
    %c0_69 = arith.constant 0 : index
    %c0_70 = arith.constant 0 : index
    %c0_71 = arith.constant 0 : index
    %68 = tpu.strided_load %arg13[%c0_69, %c0_70, %c0_71] {strides = array<i32: 1, 2, 1>} : memref<2x16x16xf32, #tpu.memory_space<vmem>>, vector<2x1x2xf32>
    %c0_72 = arith.constant 0 : index
    %c1_73 = arith.constant 1 : index
    %c0_74 = arith.constant 0 : index
    %69 = tpu.strided_load %arg13[%c0_72, %c1_73, %c0_74] {strides = array<i32: 1, 2, 1>} : memref<2x16x16xf32, #tpu.memory_space<vmem>>, vector<2x1x2xf32>
    %70 = arith.addf %68, %69 : vector<2x1x2xf32>
    %71 = vector.shape_cast %70 : vector<2x1x2xf32> to vector<2x2xf32>
    %c0_75 = arith.constant 0 : index
    %c0_76 = arith.constant 0 : index
    %72 = vector.load %arg11[%c0_75, %c0_76] : memref<2x1xf32, #tpu.memory_space<vmem>>, vector<2x1xf32>
    %cst_77 = arith.constant dense<0.000000e+00> : vector<2x1xf32>
    %73 = tpu.matmul %71, %72, %cst_77 {dimension_numbers = #tpu.dot_dimension_numbers<[1], [0], [0], [1], [0, 0, 1, 1], [], []>} : vector<2x2xf32>, vector<2x1xf32>, vector<2x1xf32> -> vector<2x1xf32>
    %74 = vector.shape_cast %73 : vector<2x1xf32> to vector<2x1x1xf32>
    %c0_78 = arith.constant 0 : index
    %c0_79 = arith.constant 0 : index
    %c0_80 = arith.constant 0 : index
    %75 = vector.load %arg6[%c0_78, %c0_79, %c0_80] : memref<2x1x1xf32, #tpu.memory_space<vmem>>, vector<2x1x1xf32>
    %76 = arith.subf %75, %74 : vector<2x1x1xf32>
    %77 = math.absf %76 : vector<2x1x1xf32>
    %78 = vector.shape_cast %77 : vector<2x1x1xf32> to vector<1x2x1x1xf32>
    %cst_81 = arith.constant dense<0.000000e+00> : vector<1xf32>
    %79 = vector.multi_reduction <add>, %78, %cst_81 [1, 2, 3] : vector<1x2x1x1xf32> to vector<1xf32>
    %80 = vector.shape_cast %79 : vector<1xf32> to vector<1x1x1x1xf32>
    %81 = vector.extract %80[0, 0, 0, 0] : f32 from vector<1x1x1x1xf32>
    %cst_82 = arith.constant 5.000000e-03 : f32
    %82 = arith.mulf %cst_82, %81 : f32
    %83 = arith.addf %18, %34 : f32
    %84 = arith.addf %83, %50 : f32
    %85 = arith.addf %84, %66 : f32
    %86 = arith.addf %85, %82 : f32
    %87 = tpu.iota {dimensions = array<i32: 0>} : vector<8x128xi32>
    %88 = tpu.iota {dimensions = array<i32: 1>} : vector<8x128xi32>
    %c0_i32 = arith.constant 0 : i32
    %89 = vector.broadcast %c0_i32 : i32 to vector<8x128xi32>
    %90 = arith.cmpi eq, %87, %89 : vector<8x128xi32>
    %c0_i32_83 = arith.constant 0 : i32
    %91 = vector.broadcast %c0_i32_83 : i32 to vector<8x128xi32>
    %92 = arith.cmpi eq, %88, %91 : vector<8x128xi32>
    %93 = arith.andi %90, %92 : vector<8x128xi1>
    %cst_84 = arith.constant 0.000000e+00 : f32
    %94 = vector.broadcast %86 : f32 to vector<8x128xf32>
    %95 = vector.broadcast %cst_84 : f32 to vector<8x128xf32>
    %96 = arith.select %93, %94, %95 : vector<8x128xi1>, vector<8x128xf32>
    %c0_85 = arith.constant 0 : index
    %c0_86 = arith.constant 0 : index
    %c0_87 = arith.constant 0 : index
    %97 = vector.load %arg12[%c0_85, %c0_86, %c0_87] : memref<1x8x128xf32, #tpu.memory_space<vmem>>, vector<1x8x128xf32>
    %98 = vector.shape_cast %97 : vector<1x8x128xf32> to vector<8x128xf32>
    %99 = vector.shape_cast %96 : vector<8x128xf32> to vector<1x8x128xf32>
    tpu.vector_store %arg12[%c0_85, %c0_86, %c0_87], %99 {strides = array<i32>} : memref<1x8x128xf32, #tpu.memory_space<vmem>>, vector<1x8x128xf32>,
    return
  }
  func.func @transform_0(%arg0: i32) -> (i32, i32, i32) {
    %c0_i32 = arith.constant 0 : i32
    %c0_i32_0 = arith.constant 0 : i32
    %c0_i32_1 = arith.constant 0 : i32
    return %arg0, %c0_i32, %c0_i32_0 : i32, i32, i32
  }
  func.func @transform_1(%arg0: i32) -> (i32, i32, i32) {
    %c0_i32 = arith.constant 0 : i32
    %c0_i32_0 = arith.constant 0 : i32
    %c0_i32_1 = arith.constant 0 : i32
    return %arg0, %c0_i32, %c0_i32_0 : i32, i32, i32
  }
  func.func @transform_2(%arg0: i32) -> (i32, i32, i32) {
    %c0_i32 = arith.constant 0 : i32
    %c0_i32_0 = arith.constant 0 : i32
    %c0_i32_1 = arith.constant 0 : i32
    return %arg0, %c0_i32, %c0_i32_0 : i32, i32, i32
  }
  func.func @transform_3(%arg0: i32) -> (i32, i32, i32) {
    %c0_i32 = arith.constant 0 : i32
    %c0_i32_0 = arith.constant 0 : i32
    %c0_i32_1 = arith.constant 0 : i32
    return %arg0, %c0_i32, %c0_i32_0 : i32, i32, i32
  }
  func.func @transform_4(%arg0: i32) -> (i32, i32, i32) {
    %c0_i32 = arith.constant 0 : i32
    %c0_i32_0 = arith.constant 0 : i32
    %c0_i32_1 = arith.constant 0 : i32
    return %arg0, %c0_i32, %c0_i32_0 : i32, i32, i32
  }
  func.func @transform_5(%arg0: i32) -> (i32, i32, i32) {
    %c0_i32 = arith.constant 0 : i32
    %c0_i32_0 = arith.constant 0 : i32
    %c0_i32_1 = arith.constant 0 : i32
    return %arg0, %c0_i32, %c0_i32_0 : i32, i32, i32
  }
  func.func @transform_6(%arg0: i32) -> (i32, i32) {
    %c0_i32 = arith.constant 0 : i32
    %c0_i32_0 = arith.constant 0 : i32
    %c0_i32_1 = arith.constant 0 : i32
    return %c0_i32, %c0_i32_0 : i32, i32
  }
  func.func @transform_7(%arg0: i32) -> (i32, i32) {
    %c0_i32 = arith.constant 0 : i32
    %c0_i32_0 = arith.constant 0 : i32
    %c0_i32_1 = arith.constant 0 : i32
    return %c0_i32, %c0_i32_0 : i32, i32
  }
  func.func @transform_8(%arg0: i32) -> (i32, i32) {
    %c0_i32 = arith.constant 0 : i32
    %c0_i32_0 = arith.constant 0 : i32
    %c0_i32_1 = arith.constant 0 : i32
    return %c0_i32, %c0_i32_0 : i32, i32
  }
  func.func @transform_9(%arg0: i32) -> (i32, i32) {
    %c0_i32 = arith.constant 0 : i32
    %c0_i32_0 = arith.constant 0 : i32
    %c0_i32_1 = arith.constant 0 : i32
    return %c0_i32, %c0_i32_0 : i32, i32
  }
  func.func @transform_10(%arg0: i32) -> (i32, i32) {
    %c0_i32 = arith.constant 0 : i32
    %c0_i32_0 = arith.constant 0 : i32
    %c0_i32_1 = arith.constant 0 : i32
    return %c0_i32, %c0_i32_0 : i32, i32
  }
  func.func @transform_11(%arg0: i32) -> (i32, i32, i32) {
    %c0_i32 = arith.constant 0 : i32
    %c0_i32_0 = arith.constant 0 : i32
    %c0_i32_1 = arith.constant 0 : i32
    return %arg0, %c0_i32, %c0_i32_0 : i32, i32, i32
  }
}

</mosaic_0001>

<llo_original>
// kernel: tpu_custom_call.1
$region0: #{tpu_custom_call.1}
  #allocation0 [shape = 'u32[]', space=smem, size = 0x4, offset = 0x4, fixed_abs, tag = 'smem constant byte address 0x4 - core index']
  #allocation1 [shape = 'u32[144,128]{1,0:T(1,128)}', space=vmem, size = 0x12000, scoped, tag = 'internal scratch']
  #allocation2 [shape = 'f32[2,16,16]{2,1,0:T(8,128)}', space=vmem, size = 0x4000, scoped, tag = 'scratch operand']
  %s0 = inlined_call_operand.hbm [shape: f32[4,64,64], index: 0, kind: input, shape index: {}]
  %s1 = inlined_call_operand.vmem [shape: f32[4,16,16], index: 1, kind: input, shape index: {}]
  %s2 = inlined_call_operand.vmem [shape: f32[4,8,8], index: 2, kind: input, shape index: {}]
  %s3 = inlined_call_operand.vmem [shape: f32[4,4,4], index: 3, kind: input, shape index: {}]
  %s4 = inlined_call_operand.vmem [shape: f32[4,2,2], index: 4, kind: input, shape index: {}]
  %s5 = inlined_call_operand.vmem [shape: f32[4,1,1], index: 5, kind: input, shape index: {}]
  %s6 = inlined_call_operand.vmem [shape: f32[64,16], index: 6, kind: input, shape index: {}]
  %s7 = inlined_call_operand.vmem [shape: f32[16,8], index: 7, kind: input, shape index: {}]
  %s8 = inlined_call_operand.vmem [shape: f32[8,4], index: 8, kind: input, shape index: {}]
  %s9 = inlined_call_operand.vmem [shape: f32[4,2], index: 9, kind: input, shape index: {}]
  %s10 = inlined_call_operand.vmem [shape: f32[2,1], index: 10, kind: input, shape index: {}]
  %s11 = inlined_call_operand.hbm [shape: f32[2,8,128], index: 11, kind: output, shape index: {}]
  %s12 = sld [smem:[#allocation0]]
  $region81: #{tpu_custom_call.1} parent=0
    _
  %s14 = ssub.s32 1, %s12
  %s15 = scalar_select 0, %s14, %s12
  $region1: #{tpu_custom_call.1} parent=0
    #allocation3 [shape = 'u8[131072]{0}', space=vmem, size = 0x20000, scoped, tag = 'input window, operand 0']
    #allocation4 [shape = 's32[2]{0}', space=sflag, size = 0x8, scoped, tag = 'scoped memory for tpu_custom_call.1']
    #allocation5 [shape = 's32[2]{0}', space=sflag, size = 0x8, scoped, tag = 'scoped memory for tpu_custom_call.1']
    #allocation6 [shape = 'u8[8192]{0}', space=vmem, size = 0x2000, scoped, tag = 'output window, operand 0']
    %16 = vsyncpa [#allocation4], 0
    %s17 = scalar_lea.sflag [#allocation4], 1
    %18 = vsyncpa %s17, 0
    %19 = vsyncpa [#allocation5], 0
    %s20 = scalar_lea.sflag [#allocation5], 1
    %21 = vsyncpa %s20, 0
    loop: start=0, step=1, limit=4
    $region2: #{tpu_custom_call.1} parent=1 // loop_pre_header
      _
    $region3: #{tpu_custom_call.1} parent=1 // loop_header
      %s23 = sphi 0, %s27
      %p24 = scmp.ge.s32.totalorder %s23, 4
      %s33 = sphi 0, %s35
      %s36 = sphi 0, %s33
      %s37 = sphi 0, %s36
      %s53 = sphi 0, %s37
      %s59 = sphi 0, %s61
      %s62 = sphi 0, %s59
      %s63 = sphi 0, %s62
      %s79 = sphi 0, %s63
      %s85 = sphi 0, %s87
      %s88 = sphi 0, %s85
      %s89 = sphi 0, %s88
      %s105 = sphi 0, %s89
      %s111 = sphi 0, %s113
      %s114 = sphi 0, %s111
      %s115 = sphi 0, %s114
      %s131 = sphi 0, %s115
      %s137 = sphi 0, %s139
      %s140 = sphi 0, %s137
      %s141 = sphi 0, %s140
      %s157 = sphi 0, %s141
      %s163 = sphi 0, %s165
      %s166 = sphi 0, %s163
      %s167 = sphi 0, %s166
      %s183 = sphi 0, %s167
      %s187 = sphi 0, %s187
      %s189 = sphi 0, %s187
      %s190 = sphi 0, %s189
      %s204 = sphi 0, %s190
      %s208 = sphi 0, %s208
      %s210 = sphi 0, %s208
      %s211 = sphi 0, %s210
      %s225 = sphi 0, %s211
      %s229 = sphi 0, %s229
      %s231 = sphi 0, %s229
      %s232 = sphi 0, %s231
      %s246 = sphi 0, %s232
      %s250 = sphi 0, %s250
      %s252 = sphi 0, %s250
      %s253 = sphi 0, %s252
      %s267 = sphi 0, %s253
      %s271 = sphi 0, %s271
      %s273 = sphi 0, %s271
      %s274 = sphi 0, %s273
      %s288 = sphi 0, %s274
      %s294 = sphi 0, %s296
      %s297 = sphi 0, %s294
      %s298 = sphi 0, %s297
      %s314 = sphi 0, %s298
    $region4: #{tpu_custom_call.1} parent=1 // loop_header_branch
      %26 = sbr.rel (%p24) target = $region8
    $region5: #{tpu_custom_call.1} parent=1 // loop_body
      %s28 = ssub.s32 %s23, 1
      %s29 = ssub.s32 %s23, 2
      %s30 = sadd.s32 %s23, 1
      %s31 = ssub.s32 %s23, %s30
      %p32 = scmp.eq.s32.totalorder %s31, 0
      %s34 = sadd.s32 %s33, 1
      %s35 = scalar_select %p32, %s33, %s34
      %p38 = pneg %p32
      %p39 = scmp.eq.s32.totalorder %s23, 1
      %p40 = por %p38, %p39
      %p41 = scmp.ne.s32.totalorder %s33, %s36
      %p42 = scmp.eq.s32.totalorder %s23, 0
      %p43 = por %p41, %p42
      %p44 = scmp.ne.s32.totalorder %s33, %s36
      %p45 = scmp.eq.s32.totalorder %s28, 1
      %p46 = por %p44, %p45
      %p47 = scmp.ne.s32.totalorder %s36, %s37
      %p48 = scmp.eq.s32.totalorder %s28, 0
      %p49 = por %p47, %p48
      %p50 = scmp.ne.s32.totalorder %s36, %s37
      %p51 = scmp.eq.s32.totalorder %s29, 1
      %p52 = por %p50, %p51
      %p54 = scmp.ne.s32.totalorder %s37, %s53
      %p55 = scmp.eq.s32.totalorder %s29, 0
      %p56 = por %p54, %p55
      %s57 = ssub.s32 %s23, %s30
      %p58 = scmp.eq.s32.totalorder %s57, 0
      %s60 = sadd.s32 %s59, 1
      %s61 = scalar_select %p58, %s59, %s60
      %p64 = pneg %p58
      %p65 = scmp.eq.s32.totalorder %s23, 1
      %p66 = por %p64, %p65
      %p67 = scmp.ne.s32.totalorder %s59, %s62
      %p68 = scmp.eq.s32.totalorder %s23, 0
      %p69 = por %p67, %p68
      %p70 = scmp.ne.s32.totalorder %s59, %s62
      %p71 = scmp.eq.s32.totalorder %s28, 1
      %p72 = por %p70, %p71
      %p73 = scmp.ne.s32.totalorder %s62, %s63
      %p74 = scmp.eq.s32.totalorder %s28, 0
      %p75 = por %p73, %p74
      %p76 = scmp.ne.s32.totalorder %s62, %s63
      %p77 = scmp.eq.s32.totalorder %s29, 1
      %p78 = por %p76, %p77
      %p80 = scmp.ne.s32.totalorder %s63, %s79
      %p81 = scmp.eq.s32.totalorder %s29, 0
      %p82 = por %p80, %p81
      %s83 = ssub.s32 %s23, %s30
      %p84 = scmp.eq.s32.totalorder %s83, 0
      %s86 = sadd.s32 %s85, 1
      %s87 = scalar_select %p84, %s85, %s86
      %p90 = pneg %p84
      %p91 = scmp.eq.s32.totalorder %s23, 1
      %p92 = por %p90, %p91
      %p93 = scmp.ne.s32.totalorder %s85, %s88
      %p94 = scmp.eq.s32.totalorder %s23, 0
      %p95 = por %p93, %p94
      %p96 = scmp.ne.s32.totalorder %s85, %s88
      %p97 = scmp.eq.s32.totalorder %s28, 1
      %p98 = por %p96, %p97
      %p99 = scmp.ne.s32.totalorder %s88, %s89
      %p100 = scmp.eq.s32.totalorder %s28, 0
      %p101 = por %p99, %p100
      %p102 = scmp.ne.s32.totalorder %s88, %s89
      %p103 = scmp.eq.s32.totalorder %s29, 1
      %p104 = por %p102, %p103
      %p106 = scmp.ne.s32.totalorder %s89, %s105
      %p107 = scmp.eq.s32.totalorder %s29, 0
      %p108 = por %p106, %p107
      %s109 = ssub.s32 %s23, %s30
      %p110 = scmp.eq.s32.totalorder %s109, 0
      %s112 = sadd.s32 %s111, 1
      %s113 = scalar_select %p110, %s111, %s112
      %p116 = pneg %p110
      %p117 = scmp.eq.s32.totalorder %s23, 1
      %p118 = por %p116, %p117
      %p119 = scmp.ne.s32.totalorder %s111, %s114
      %p120 = scmp.eq.s32.totalorder %s23, 0
      %p121 = por %p119, %p120
      %p122 = scmp.ne.s32.totalorder %s111, %s114
      %p123 = scmp.eq.s32.totalorder %s28, 1
      %p124 = por %p122, %p123
      %p125 = scmp.ne.s32.totalorder %s114, %s115
      %p126 = scmp.eq.s32.totalorder %s28, 0
      %p127 = por %p125, %p126
      %p128 = scmp.ne.s32.totalorder %s114, %s115
      %p129 = scmp.eq.s32.totalorder %s29, 1
      %p130 = por %p128, %p129
      %p132 = scmp.ne.s32.totalorder %s115, %s131
      %p133 = scmp.eq.s32.totalorder %s29, 0
      %p134 = por %p132, %p133
      %s135 = ssub.s32 %s23, %s30
      %p136 = scmp.eq.s32.totalorder %s135, 0
      %s138 = sadd.s32 %s137, 1
      %s139 = scalar_select %p136, %s137, %s138
      %p142 = pneg %p136
      %p143 = scmp.eq.s32.totalorder %s23, 1
      %p144 = por %p142, %p143
      %p145 = scmp.ne.s32.totalorder %s137, %s140
      %p146 = scmp.eq.s32.totalorder %s23, 0
      %p147 = por %p145, %p146
      %p148 = scmp.ne.s32.totalorder %s137, %s140
      %p149 = scmp.eq.s32.totalorder %s28, 1
      %p150 = por %p148, %p149
      %p151 = scmp.ne.s32.totalorder %s140, %s141
      %p152 = scmp.eq.s32.totalorder %s28, 0
      %p153 = por %p151, %p152
      %p154 = scmp.ne.s32.totalorder %s140, %s141
      %p155 = scmp.eq.s32.totalorder %s29, 1
      %p156 = por %p154, %p155
      %p158 = scmp.ne.s32.totalorder %s141, %s157
      %p159 = scmp.eq.s32.totalorder %s29, 0
      %p160 = por %p158, %p159
      %s161 = ssub.s32 %s23, %s30
      %p162 = scmp.eq.s32.totalorder %s161, 0
      %s164 = sadd.s32 %s163, 1
      %s165 = scalar_select %p162, %s163, %s164
      %p168 = pneg %p162
      %p169 = scmp.eq.s32.totalorder %s23, 1
      %p170 = por %p168, %p169
      %p171 = scmp.ne.s32.totalorder %s163, %s166
      %p172 = scmp.eq.s32.totalorder %s23, 0
      %p173 = por %p171, %p172
      %p174 = scmp.ne.s32.totalorder %s163, %s166
      %p175 = scmp.eq.s32.totalorder %s28, 1
      %p176 = por %p174, %p175
      %p177 = scmp.ne.s32.totalorder %s166, %s167
      %p178 = scmp.eq.s32.totalorder %s28, 0
      %p179 = por %p177, %p178
      %p180 = scmp.ne.s32.totalorder %s166, %s167
      %p181 = scmp.eq.s32.totalorder %s29, 1
      %p182 = por %p180, %p181
      %p184 = scmp.ne.s32.totalorder %s167, %s183
      %p185 = scmp.eq.s32.totalorder %s29, 0
      %p186 = por %p184, %p185
      %s188 = sadd.s32 %s187, 1
      %p191 = scmp.eq.s32.totalorder %s23, 1
      %p192 = scmp.ne.s32.totalorder %s187, %s189
      %p193 = scmp.eq.s32.totalorder %s23, 0
      %p194 = por %p192, %p193
      %p195 = scmp.ne.s32.totalorder %s187, %s189
      %p196 = scmp.eq.s32.totalorder %s28, 1
      %p197 = por %p195, %p196
      %p198 = scmp.ne.s32.totalorder %s189, %s190
      %p199 = scmp.eq.s32.totalorder %s28, 0
      %p200 = por %p198, %p199
      %p201 = scmp.ne.s32.totalorder %s189, %s190
      %p202 = scmp.eq.s32.totalorder %s29, 1
      %p203 = por %p201, %p202
      %p205 = scmp.ne.s32.totalorder %s190, %s204
      %p206 = scmp.eq.s32.totalorder %s29, 0
      %p207 = por %p205, %p206
      %s209 = sadd.s32 %s208, 1
      %p212 = scmp.eq.s32.totalorder %s23, 1
      %p213 = scmp.ne.s32.totalorder %s208, %s210
      %p214 = scmp.eq.s32.totalorder %s23, 0
      %p215 = por %p213, %p214
      %p216 = scmp.ne.s32.totalorder %s208, %s210
      %p217 = scmp.eq.s32.totalorder %s28, 1
      %p218 = por %p216, %p217
      %p219 = scmp.ne.s32.totalorder %s210, %s211
      %p220 = scmp.eq.s32.totalorder %s28, 0
      %p221 = por %p219, %p220
      %p222 = scmp.ne.s32.totalorder %s210, %s211
      %p223 = scmp.eq.s32.totalorder %s29, 1
      %p224 = por %p222, %p223
      %p226 = scmp.ne.s32.totalorder %s211, %s225
      %p227 = scmp.eq.s32.totalorder %s29, 0
      %p228 = por %p226, %p227
      %s230 = sadd.s32 %s229, 1
      %p233 = scmp.eq.s32.totalorder %s23, 1
      %p234 = scmp.ne.s32.totalorder %s229, %s231
      %p235 = scmp.eq.s32.totalorder %s23, 0
      %p236 = por %p234, %p235
      %p237 = scmp.ne.s32.totalorder %s229, %s231
      %p238 = scmp.eq.s32.totalorder %s28, 1
      %p239 = por %p237, %p238
      %p240 = scmp.ne.s32.totalorder %s231, %s232
      %p241 = scmp.eq.s32.totalorder %s28, 0
      %p242 = por %p240, %p241
      %p243 = scmp.ne.s32.totalorder %s231, %s232
      %p244 = scmp.eq.s32.totalorder %s29, 1
      %p245 = por %p243, %p244
      %p247 = scmp.ne.s32.totalorder %s232, %s246
      %p248 = scmp.eq.s32.totalorder %s29, 0
      %p249 = por %p247, %p248
      %s251 = sadd.s32 %s250, 1
      %p254 = scmp.eq.s32.totalorder %s23, 1
      %p255 = scmp.ne.s32.totalorder %s250, %s252
      %p256 = scmp.eq.s32.totalorder %s23, 0
      %p257 = por %p255, %p256
      %p258 = scmp.ne.s32.totalorder %s250, %s252
      %p259 = scmp.eq.s32.totalorder %s28, 1
      %p260 = por %p258, %p259
      %p261 = scmp.ne.s32.totalorder %s252, %s253
      %p262 = scmp.eq.s32.totalorder %s28, 0
      %p263 = por %p261, %p262
      %p264 = scmp.ne.s32.totalorder %s252, %s253
      %p265 = scmp.eq.s32.totalorder %s29, 1
      %p266 = por %p264, %p265
      %p268 = scmp.ne.s32.totalorder %s253, %s267
      %p269 = scmp.eq.s32.totalorder %s29, 0
      %p270 = por %p268, %p269
      %s272 = sadd.s32 %s271, 1
      %p275 = scmp.eq.s32.totalorder %s23, 1
      %p276 = scmp.ne.s32.totalorder %s271, %s273
      %p277 = scmp.eq.s32.totalorder %s23, 0
      %p278 = por %p276, %p277
      %p279 = scmp.ne.s32.totalorder %s271, %s273
      %p280 = scmp.eq.s32.totalorder %s28, 1
      %p281 = por %p279, %p280
      %p282 = scmp.ne.s32.totalorder %s273, %s274
      %p283 = scmp.eq.s32.totalorder %s28, 0
      %p284 = por %p282, %p283
      %p285 = scmp.ne.s32.totalorder %s273, %s274
      %p286 = scmp.eq.s32.totalorder %s29, 1
      %p287 = por %p285, %p286
      %p289 = scmp.ne.s32.totalorder %s274, %s288
      %p290 = scmp.eq.s32.totalorder %s29, 0
      %p291 = por %p289, %p290
      %s292 = ssub.s32 %s23, %s30
      %p293 = scmp.eq.s32.totalorder %s292, 0
      %s295 = sadd.s32 %s294, 1
      %s296 = scalar_select %p293, %s294, %s295
      %p299 = pneg %p293
      %p300 = scmp.eq.s32.totalorder %s23, 1
      %p301 = por %p299, %p300
      %p302 = scmp.ne.s32.totalorder %s294, %s297
      %p303 = scmp.eq.s32.totalorder %s23, 0
      %p304 = por %p302, %p303
      %p305 = scmp.ne.s32.totalorder %s294, %s297
      %p306 = scmp.eq.s32.totalorder %s28, 1
      %p307 = por %p305, %p306
      %p308 = scmp.ne.s32.totalorder %s297, %s298
      %p309 = scmp.eq.s32.totalorder %s28, 0
      %p310 = por %p308, %p309
      %p311 = scmp.ne.s32.totalorder %s297, %s298
      %p312 = scmp.eq.s32.totalorder %s29, 1
      %p313 = por %p311, %p312
      %p315 = scmp.ne.s32.totalorder %s298, %s314
      %p316 = scmp.eq.s32.totalorder %s29, 0
      %p317 = por %p315, %p316
      %p318 = scmp.le.s32.totalorder 1, %s23
      %p319 = scmp.lt.s32.totalorder %s23, 3
      %p320 = pnand %p318, %p319
      %p321 = pneg %p320
      // Predicated region
      $region9: #{tpu_custom_call.1} parent=5 // pred_check
        _
      $region10: #{tpu_custom_call.1} parent=5 // pred_check_branch
        %323 = sbr.rel (%p320) target = $region12
      $region11: #{tpu_custom_call.1} parent=5 // pred_region
        %s324 = ssub.s32 %s23, 1
        // Predicated region
        $region13: #{tpu_custom_call.1} parent=11 // pred_check
          %p325 = pneg %p200
        $region14: #{tpu_custom_call.1} parent=11 // pred_check_branch
          %327 = sbr.rel (%p325) target = $region16
        $region15: #{tpu_custom_call.1} parent=11 // pred_region
          _
        $region16: #{tpu_custom_call.1} parent=11 // pred_fallthru
          _
        // Predicated region
        $region17: #{tpu_custom_call.1} parent=11 // pred_check
          %p328 = pneg %p221
        $region18: #{tpu_custom_call.1} parent=11 // pred_check_branch
          %330 = sbr.rel (%p328) target = $region20
        $region19: #{tpu_custom_call.1} parent=11 // pred_region
          _
        $region20: #{tpu_custom_call.1} parent=11 // pred_fallthru
          _
        // Predicated region
        $region21: #{tpu_custom_call.1} parent=11 // pred_check
          %p331 = pneg %p242
        $region22: #{tpu_custom_call.1} parent=11 // pred_check_branch
          %333 = sbr.rel (%p331) target = $region24
        $region23: #{tpu_custom_call.1} parent=11 // pred_region
          _
        $region24: #{tpu_custom_call.1} parent=11 // pred_fallthru
          _
        // Predicated region
        $region25: #{tpu_custom_call.1} parent=11 // pred_check
          %p334 = pneg %p263
        $region26: #{tpu_custom_call.1} parent=11 // pred_check_branch
          %336 = sbr.rel (%p334) target = $region28
        $region27: #{tpu_custom_call.1} parent=11 // pred_region
          _
        $region28: #{tpu_custom_call.1} parent=11 // pred_fallthru
          _
        // Predicated region
        $region29: #{tpu_custom_call.1} parent=11 // pred_check
          %p337 = pneg %p284
        $region30: #{tpu_custom_call.1} parent=11 // pred_check_branch
          %339 = sbr.rel (%p337) target = $region32
        $region31: #{tpu_custom_call.1} parent=11 // pred_region
          _
        $region32: #{tpu_custom_call.1} parent=11 // pred_fallthru
          _
      $region12: #{tpu_custom_call.1} parent=5 // pred_fallthru
        _
      %p340 = scmp.lt.s32.totalorder %s23, 2
      // Predicated region
      $region33: #{tpu_custom_call.1} parent=5 // pred_check
        %p341 = pneg %p340
      $region34: #{tpu_custom_call.1} parent=5 // pred_check_branch
        %343 = sbr.rel (%p341) target = $region36
      $region35: #{tpu_custom_call.1} parent=5 // pred_region
        // Predicated region
        $region37: #{tpu_custom_call.1} parent=35 // pred_check
          %p344 = pneg %p43
        $region38: #{tpu_custom_call.1} parent=35 // pred_check_branch
          %346 = sbr.rel (%p344) target = $region40
        $region39: #{tpu_custom_call.1} parent=35 // pred_region
          %s347 = sand.u32 %s33, 1
          %s348 = scalar_lea.sflag [#allocation4], %s347
          %s349 = sand.u32 %s33, 1
          %s350 = smul.addr %s349, 128
          %s351 = scalar_lea.vmem [#allocation3], %s350
          %s352 = smul.u32 2, %s23
          %s354 = ssub.s32 2048, 2048
          %355 = vsyncadd %s348, %s354
          %s356 = smul.addr %s352, 8
          %s357 = smul.addr %s356, 128
          %s358 = scalar_lea.hbm %s0, %s357
          %s359 = sshll.u32 %s351, 4
          %s360 = int_to_ptr.vmem [resolvable:$true] %s359
          %365 = dma.hbm_to_vmem [thread:$0]  %s358, 2048, %s360, %s348, 128, 128, 8
        $region40: #{tpu_custom_call.1} parent=35 // pred_fallthru
          _
        // Predicated region
        $region41: #{tpu_custom_call.1} parent=35 // pred_check
          %p366 = pneg %p69
        $region42: #{tpu_custom_call.1} parent=35 // pred_check_branch
          %368 = sbr.rel (%p366) target = $region44
        $region43: #{tpu_custom_call.1} parent=35 // pred_region
          %s369 = smul.u32 2, %s23
          %p370 = scmp.lt.s32.totalorder %s369, 3
          %s371 = scalar_select %p370, %s369, 3
          %s372 = smul.addr %s371, 2
          %s373 = smul.addr %s372, 8
          %s374 = scalar_lea.vmem %s1, %s373
          %s375 = smul.u32 2, %s23
        $region44: #{tpu_custom_call.1} parent=35 // pred_fallthru
          _
        // Predicated region
        $region45: #{tpu_custom_call.1} parent=35 // pred_check
          %p376 = pneg %p95
        $region46: #{tpu_custom_call.1} parent=35 // pred_check_branch
          %378 = sbr.rel (%p376) target = $region48
        $region47: #{tpu_custom_call.1} parent=35 // pred_region
          %s379 = smul.u32 2, %s23
          %p380 = scmp.lt.s32.totalorder %s379, 3
          %s381 = scalar_select %p380, %s379, 3
          %s382 = smul.addr %s381, 8
          %s383 = scalar_lea.vmem %s2, %s382
          %s384 = smul.u32 2, %s23
        $region48: #{tpu_custom_call.1} parent=35 // pred_fallthru
          _
        // Predicated region
        $region49: #{tpu_custom_call.1} parent=35 // pred_check
          %p385 = pneg %p121
        $region50: #{tpu_custom_call.1} parent=35 // pred_check_branch
          %387 = sbr.rel (%p385) target = $region52
        $region51: #{tpu_custom_call.1} parent=35 // pred_region
          %s388 = smul.u32 2, %s23
          %p389 = scmp.lt.s32.totalorder %s388, 3
          %s390 = scalar_select %p389, %s388, 3
          %s391 = smul.addr %s390, 4
          %s392 = scalar_lea.vmem %s3, %s391
          %s393 = smul.u32 2, %s23
        $region52: #{tpu_custom_call.1} parent=35 // pred_fallthru
          _
        // Predicated region
        $region53: #{tpu_custom_call.1} parent=35 // pred_check
          %p394 = pneg %p147
        $region54: #{tpu_custom_call.1} parent=35 // pred_check_branch
          %396 = sbr.rel (%p394) target = $region56
        $region55: #{tpu_custom_call.1} parent=35 // pred_region
          %s397 = smul.u32 2, %s23
          %p398 = scmp.lt.s32.totalorder %s397, 3
          %s399 = scalar_select %p398, %s397, 3
          %s400 = smul.addr %s399, 2
          %s401 = scalar_lea.vmem %s4, %s400
          %s402 = smul.u32 2, %s23
        $region56: #{tpu_custom_call.1} parent=35 // pred_fallthru
          _
        // Predicated region
        $region57: #{tpu_custom_call.1} parent=35 // pred_check
          %p403 = pneg %p173
        $region58: #{tpu_custom_call.1} parent=35 // pred_check_branch
          %405 = sbr.rel (%p403) target = $region60
        $region59: #{tpu_custom_call.1} parent=35 // pred_region
          %s406 = smul.u32 2, %s23
          %p407 = scmp.lt.s32.totalorder %s406, 3
          %s408 = scalar_select %p407, %s406, 3
          %s409 = scalar_lea.vmem %s5, %s408
          %s410 = smul.u32 2, %s23
        $region60: #{tpu_custom_call.1} parent=35 // pred_fallthru
          _
      $region36: #{tpu_custom_call.1} parent=5 // pred_fallthru
        _
      %p411 = scmp.le.s32.totalorder 1, %s23
      %p412 = scmp.lt.s32.totalorder %s23, 3
      %p413 = pnand %p411, %p412
      %p414 = pneg %p413
      // Predicated region
      $region61: #{tpu_custom_call.1} parent=5 // pred_check
        _
      $region62: #{tpu_custom_call.1} parent=5 // pred_check_branch
        %416 = sbr.rel (%p413) target = $region64
      $region63: #{tpu_custom_call.1} parent=5 // pred_region
        %s417 = ssub.s32 %s23, 1
        %s418 = sand.u32 %s36, 1
        %s419 = scalar_lea.sflag [#allocation4], %s418
        %s420 = sand.u32 %s36, 1
        %s421 = smul.addr %s420, 128
        %s422 = scalar_lea.vmem [#allocation3], %s421
        // Predicated region
        $region65: #{tpu_custom_call.1} parent=63 // pred_check
          %p423 = pneg %p49
        $region66: #{tpu_custom_call.1} parent=63 // pred_check_branch
          %425 = sbr.rel (%p423) target = $region68
        $region67: #{tpu_custom_call.1} parent=63 // pred_region
          %426 = dma.done %s419, 2048
        $region68: #{tpu_custom_call.1} parent=63 // pred_fallthru
          _
        %s427 = sand.u32 %s36, 1
        %s428 = scalar_lea.sflag [#allocation4], %s427
        %s429 = sand.u32 %s36, 1
        %s430 = smul.addr %s429, 128
        %s431 = scalar_lea.vmem [#allocation3], %s430
        %p432 = pneg %p49
        %p433 = pneg %p46
        %s434 = smul.u32 2, %s28
        %p435 = scmp.lt.s32.totalorder %s434, 3
        %s436 = scalar_select %p435, %s434, 3
        %s437 = smul.addr %s436, 2
        %s438 = smul.addr %s437, 8
        %s439 = scalar_lea.vmem %s1, %s438
        %p440 = pneg %p75
        %p441 = pneg %p72
        %s442 = smul.u32 2, %s28
        %p443 = scmp.lt.s32.totalorder %s442, 3
        %s444 = scalar_select %p443, %s442, 3
        %s445 = smul.addr %s444, 8
        %s446 = scalar_lea.vmem %s2, %s445
        %p447 = pneg %p101
        %p448 = pneg %p98
        %s449 = smul.u32 2, %s28
        %p450 = scmp.lt.s32.totalorder %s449, 3
        %s451 = scalar_select %p450, %s449, 3
        %s452 = smul.addr %s451, 4
        %s453 = scalar_lea.vmem %s3, %s452
        %p454 = pneg %p127
        %p455 = pneg %p124
        %s456 = smul.u32 2, %s28
        %p457 = scmp.lt.s32.totalorder %s456, 3
        %s458 = scalar_select %p457, %s456, 3
        %s459 = smul.addr %s458, 2
        %s460 = scalar_lea.vmem %s4, %s459
        %p461 = pneg %p153
        %p462 = pneg %p150
        %s463 = smul.u32 2, %s28
        %p464 = scmp.lt.s32.totalorder %s463, 3
        %s465 = scalar_select %p464, %s463, 3
        %s466 = scalar_lea.vmem %s5, %s465
        %p467 = pneg %p179
        %p468 = pneg %p176
        %p469 = pneg %p200
        %p470 = pneg %p197
        %p471 = pneg %p221
        %p472 = pneg %p218
        %p473 = pneg %p242
        %p474 = pneg %p239
        %p475 = pneg %p263
        %p476 = pneg %p260
        %p477 = pneg %p284
        %p478 = pneg %p281
        %p479 = pneg %p310
        %p480 = pneg %p307
        %s481 = sand.u32 %s297, 1
        %s482 = scalar_lea.sflag [#allocation5], %s481
        %s483 = sand.u32 %s297, 1
        %s484 = smul.addr %s483, 8
        %s485 = scalar_lea.vmem [#allocation6], %s484
        %s486 = smul.u32 2, %s28
        %s487 = smul.u32 2, %s28
        %p488 = scmp.lt.s32.totalorder %s487, 3
        %s489 = scalar_select %p488, %s487, 3
        %s490 = smul.addr %s489, 2
        %s491 = smul.addr %s490, 8
        %s492 = scalar_lea.vmem %s1, %s491
        %s493 = smul.u32 2, %s28
        %s494 = smul.u32 2, %s28
        %p495 = scmp.lt.s32.totalorder %s494, 3
        %s496 = scalar_select %p495, %s494, 3
        %s497 = smul.addr %s496, 8
        %s498 = scalar_lea.vmem %s2, %s497
        %s499 = smul.u32 2, %s28
        %s500 = smul.u32 2, %s28
        %p501 = scmp.lt.s32.totalorder %s500, 3
        %s502 = scalar_select %p501, %s500, 3
        %s503 = smul.addr %s502, 4
        %s504 = scalar_lea.vmem %s3, %s503
        %s505 = smul.u32 2, %s28
        %s506 = smul.u32 2, %s28
        %p507 = scmp.lt.s32.totalorder %s506, 3
        %s508 = scalar_select %p507, %s506, 3
        %s509 = smul.addr %s508, 2
        %s510 = scalar_lea.vmem %s4, %s509
        %s511 = smul.u32 2, %s28
        %s512 = smul.u32 2, %s28
        %p513 = scmp.lt.s32.totalorder %s512, 3
        %s514 = scalar_select %p513, %s512, 3
        %s515 = scalar_lea.vmem %s5, %s514
        %s516 = smul.u32 2, %s28
        %v517 = vld [vmem:[%s422] ss:$4 sm:$0xff]
        %s518 = scalar_lea.vmem %s422, 32 [#allocation3]
        %v519 = vld [vmem:[%s518] ss:$4 sm:$0xff]
        %s520 = scalar_lea.vmem %s422, 64 [#allocation3]
        %v521 = vld [vmem:[%s520] ss:$4 sm:$0xff]
        %s522 = scalar_lea.vmem %s422, 96 [#allocation3]
        %v523 = vld [vmem:[%s522] ss:$4 sm:$0xff]
        %s524 = scalar_lea.vmem %s422, 1 [#allocation3]
        %v525 = vld [vmem:[%s524] ss:$4 sm:$0xff]
        %s526 = scalar_lea.vmem %s422, 33 [#allocation3]
        %v527 = vld [vmem:[%s526] ss:$4 sm:$0xff]
        %s528 = scalar_lea.vmem %s422, 65 [#allocation3]
        %v529 = vld [vmem:[%s528] ss:$4 sm:$0xff]
        %s530 = scalar_lea.vmem %s422, 97 [#allocation3]
        %v531 = vld [vmem:[%s530] ss:$4 sm:$0xff]
        %v532 = vadd.f32 %v517, %v525
        %v533 = vadd.f32 %v519, %v527
        %v534 = vadd.f32 %v521, %v529
        %v535 = vadd.f32 %v523, %v531
        %s536 = scalar_lea.vmem %s422, 2 [#allocation3]
        %v537 = vld [vmem:[%s536] ss:$4 sm:$0xff]
        %s538 = scalar_lea.vmem %s422, 34 [#allocation3]
        %v539 = vld [vmem:[%s538] ss:$4 sm:$0xff]
        %s540 = scalar_lea.vmem %s422, 66 [#allocation3]
        %v541 = vld [vmem:[%s540] ss:$4 sm:$0xff]
        %s542 = scalar_lea.vmem %s422, 98 [#allocation3]
        %v543 = vld [vmem:[%s542] ss:$4 sm:$0xff]
        %v544 = vadd.f32 %v532, %v537
        %v545 = vadd.f32 %v533, %v539
        %v546 = vadd.f32 %v534, %v541
        %v547 = vadd.f32 %v535, %v543
        %s548 = scalar_lea.vmem %s422, 3 [#allocation3]
        %v549 = vld [vmem:[%s548] ss:$4 sm:$0xff]
        %s550 = scalar_lea.vmem %s422, 35 [#allocation3]
        %v551 = vld [vmem:[%s550] ss:$4 sm:$0xff]
        %s552 = scalar_lea.vmem %s422, 67 [#allocation3]
        %v553 = vld [vmem:[%s552] ss:$4 sm:$0xff]
        %s554 = scalar_lea.vmem %s422, 99 [#allocation3]
        %v555 = vld [vmem:[%s554] ss:$4 sm:$0xff]
        %v556 = vadd.f32 %v544, %v549
        %v557 = vadd.f32 %v545, %v551
        %v558 = vadd.f32 %v546, %v553
        %v559 = vadd.f32 %v547, %v555
        %v560 = vld [vmem:[%s6] sm:$0xff]
        %v561 = vld [vmem:[%s6 + $0x8] sm:$0xff]
        %v562 = vld [vmem:[%s6 + $0x10] sm:$0xff]
        %v563 = vld [vmem:[%s6 + $0x18] sm:$0xff]
        %v564 = vld [vmem:[%s6 + $0x20] sm:$0xff]
        %v565 = vld [vmem:[%s6 + $0x28] sm:$0xff]
        %v566 = vld [vmem:[%s6 + $0x30] sm:$0xff]
        %v567 = vld [vmem:[%s6 + $0x38] sm:$0xff]
        %vm568 = vcmask 523264
        %v570 = vsel %vm568, %v556, 0
        %v573 = vsel %vm568, %v557, 0
        %v576 = vsel %vm568, %v558, 0
        %v579 = vsel %vm568, %v559, 0
        %581 = vmatprep.subr.mxu0 0.0
        %582 = vmatpush1.msra.mxu0 %v560
        %583 = vmatprep.subr.mxu0 0.0
        %584 = vmatpush1.msra.mxu0 %v561
        %585 = vmatprep.subr.mxu0 0.0
        %586 = vmatpush1.msra.mxu0 %v562
        %587 = vmatprep.subr.mxu0 0.0
        %588 = vmatpush1.msra.mxu0 %v563
        %589 = vmatprep.subr.mxu0 0.0
        %590 = vmatpush1.msra.mxu0 %v564
        %591 = vmatprep.subr.mxu0 0.0
        %592 = vmatpush1.msra.mxu0 %v565
        %593 = vmatprep.subr.mxu0 0.0
        %594 = vmatpush1.msra.mxu0 %v566
        %595 = vmatprep.subr.mxu0 0.0
        %596 = vmatpush1.msra.mxu0 %v567
        %597 = vmatprep.subr.mxu0 0.0
        %598 = vmatpush1.msra.mxu0 0.0
        %599 = vmatprep.subr.mxu0 0.0
        %600 = vmatpush1.msra.mxu0 0.0
        %601 = vmatprep.subr.mxu0 0.0
        %602 = vmatpush1.msra.mxu0 0.0
        %603 = vmatprep.subr.mxu0 0.0
        %604 = vmatpush1.msra.mxu0 0.0
        %605 = vmatprep.subr.mxu0 0.0
        %606 = vmatpush1.msra.mxu0 0.0
        %607 = vmatprep.subr.mxu0 0.0
        %608 = vmatpush1.msra.mxu0 0.0
        %609 = vmatprep.subr.mxu0 0.0
        %610 = vmatpush1.msra.mxu0 0.0
        %611 = vmatprep.subr.mxu0 0.0
        %612 = vmatpush1.msra.mxu0 0.0
        %613 = vmatprep.subr.mxu0 0.0
        %614 = vmatpush1.msra.mxu0 0.0
        %615 = vmatprep.subr.mxu0 0.0
        %616 = vmatpush1.msra.mxu0 0.0
        %617 = vmatprep.subr.mxu0 0.0
        %618 = vmatpush1.msra.mxu0 0.0
        %619 = vmatprep.subr.mxu0 0.0
        %620 = vmatpush1.msra.mxu0 0.0
        %621 = vmatprep.subr.mxu0 0.0
        %622 = vmatpush1.msra.mxu0 0.0
        %623 = vmatprep.subr.mxu0 0.0
        %624 = vmatpush1.msra.mxu0 0.0
        %625 = vmatprep.subr.mxu0 0.0
        %626 = vmatpush1.msra.mxu0 0.0
        %627 = vmatprep.subr.mxu0 0.0
        %628 = vmatpush1.msra.mxu0 0.0
        %629 = vmatprep.subr.mxu0 0.0
        %630 = vmatpush1.msra.mxu0 0.0
        %631 = vmatprep.subr.mxu0 0.0
        %632 = vmatpush1.msra.mxu0 0.0
        %633 = vmatprep.subr.mxu0 0.0
        %634 = vmatpush1.msra.mxu0 0.0
        %635 = vmatprep.subr.mxu0 0.0
        %636 = vmatpush1.msra.mxu0 0.0
        %637 = vmatprep.subr.mxu0 0.0
        %638 = vmatpush1.msra.mxu0 0.0
        %639 = vmatprep.subr.mxu0 0.0
        %640 = vmatpush1.msra.mxu0 0.0
        %641 = vmatprep.subr.mxu0 0.0
        %642 = vmatpush1.msra.mxu0 0.0
        %643 = vmatprep.subr.mxu0 0.0
        %644 = vmatpush1.msra.mxu0 0.0
        %645 = vmatprep.mubr.f32.mxu0 0.0
        %646 = vmatmul.mubr.f32.gmra.mrb[0].mxu0 %v570
        %v647 = vpop.f32.mrb[0].mxu0
        %v648 = vadd.f32 0.0, %v647
        %v649 = vpop.f32.mrb[0].mxu0
        %650 = vmatprep.mubr.f32.mxu0 0.0
        %651 = vmatmul.mubr.f32.gmra.mrb[0].mxu0 %v573
        %v652 = vpop.f32.mrb[0].mxu0
        %v653 = vadd.f32 0.0, %v652
        %v654 = vpop.f32.mrb[0].mxu0
        %655 = vmatprep.mubr.f32.mxu0 0.0
        %656 = vmatmul.mubr.f32.gmra.mrb[0].mxu0 %v576
        %v657 = vpop.f32.mrb[0].mxu0
        %v658 = vadd.f32 0.0, %v657
        %v659 = vpop.f32.mrb[0].mxu0
        %660 = vmatprep.mubr.f32.mxu0 0.0
        %661 = vmatmul.mubr.f32.gmra.mrb[0].mxu0 %v579
        %v662 = vpop.f32.mrb[0].mxu0
        %v663 = vadd.f32 0.0, %v662
        %v664 = vpop.f32.mrb[0].mxu0
        %665 = vdwg.mxu0
        %v666 = vld [vmem:[%s492] sm:$0xff]
        %v667 = vld [vmem:[%s492 + $0x8] sm:$0xff]
        %v668 = vld [vmem:[%s492 + $0x10] sm:$0xff]
        %v669 = vld [vmem:[%s492 + $0x18] sm:$0xff]
        %v670 = vsub.f32 %v666, %v648
        %v671 = vsub.f32 %v667, %v653
        %v672 = vsub.f32 %v668, %v658
        %v673 = vsub.f32 %v669, %v663
        %v674 = vand.u32 2147483647, %v670
        %v675 = vand.u32 2147483647, %v671
        %v676 = vand.u32 2147483647, %v672
        %v677 = vand.u32 2147483647, %v673
        %vm678 = vcmask 130048
        %v679 = vsel %vm678, %v674, 0.0
        %v680 = vsel %vm678, %v675, 0.0
        %v681 = vadd.f32 %v679, %v680
        %v682 = vsel %vm678, %v676, 0.0
        %v683 = vadd.f32 %v681, %v682
        %v684 = vsel %vm678, %v677, 0.0
        %v685 = vadd.f32 %v683, %v684
        %686 = vadd.xlane.f32.xlu0 %v685
        %v687 = vpop.xlane.xlu0 %686
        %v688 = vrot.slane %v687, 4
        %v689 = vadd.f32 %v687, %v688
        %v690 = vrot.slane %v689, 2
        %v691 = vadd.f32 %v689, %v690
        %v692 = vrot.slane %v691, 1
        %v693 = vadd.f32 %v691, %v692
        %s694 = vtos %v693
        %s695 = smul.f32 %s694, 0.0003125
        %696 = vst.msk [vmem:[#allocation2] sm:$0xff] %vm678, %v648
        %697 = vst.msk [vmem:[#allocation2 + $0x8] sm:$0xff] %vm678, %v653
        %698 = vst.msk [vmem:[#allocation2 + $0x10] sm:$0xff] %vm678, %v658
        %699 = vst.msk [vmem:[#allocation2 + $0x18] sm:$0xff] %vm678, %v663
        %v700 = vld [vmem:[#allocation2] ss:$2 sm:$0xff]
        %s701 = scalar_lea.vmem [#allocation2], 16
        %v702 = vld [vmem:[%s701] ss:$2 sm:$0xff]
        %s703 = scalar_lea.vmem [#allocation2], 1
        %v704 = vld [vmem:[%s703] ss:$2 sm:$0xff]
        %s705 = scalar_lea.vmem [#allocation2], 17
        %v706 = vld [vmem:[%s705] ss:$2 sm:$0xff]
        %v707 = vadd.f32 %v700, %v704
        %v708 = vadd.f32 %v702, %v706
        %v709 = vld [vmem:[%s7] sm:$0xff]
        %v710 = vld [vmem:[%s7 + $0x8] sm:$0xff]
        %v712 = vsel %vm678, %v707, 0
        %v715 = vsel %vm678, %v708, 0
        %717 = vmatprep.subr.mxu0 0.0
        %718 = vmatpush1.msra.mxu0 %v709
        %719 = vmatprep.subr.mxu0 0.0
        %720 = vmatpush1.msra.mxu0 %v710
        %721 = vmatprep.subr.mxu0 0.0
        %722 = vmatpush1.msra.mxu0 0.0
        %723 = vmatprep.subr.mxu0 0.0
        %724 = vmatpush1.msra.mxu0 0.0
        %725 = vmatprep.subr.mxu0 0.0
        %726 = vmatpush1.msra.mxu0 0.0
        %727 = vmatprep.subr.mxu0 0.0
        %728 = vmatpush1.msra.mxu0 0.0
        %729 = vmatprep.subr.mxu0 0.0
        %730 = vmatpush1.msra.mxu0 0.0
        %731 = vmatprep.subr.mxu0 0.0
        %732 = vmatpush1.msra.mxu0 0.0
        %733 = vmatprep.subr.mxu0 0.0
        %734 = vmatpush1.msra.mxu0 0.0
        %735 = vmatprep.subr.mxu0 0.0
        %736 = vmatpush1.msra.mxu0 0.0
        %737 = vmatprep.subr.mxu0 0.0
        %738 = vmatpush1.msra.mxu0 0.0
        %739 = vmatprep.subr.mxu0 0.0
        %740 = vmatpush1.msra.mxu0 0.0
        %741 = vmatprep.subr.mxu0 0.0
        %742 = vmatpush1.msra.mxu0 0.0
        %743 = vmatprep.subr.mxu0 0.0
        %744 = vmatpush1.msra.mxu0 0.0
        %745 = vmatprep.subr.mxu0 0.0
        %746 = vmatpush1.msra.mxu0 0.0
        %747 = vmatprep.subr.mxu0 0.0
        %748 = vmatpush1.msra.mxu0 0.0
        %749 = vmatprep.subr.mxu0 0.0
        %750 = vmatpush1.msra.mxu0 0.0
        %751 = vmatprep.subr.mxu0 0.0
        %752 = vmatpush1.msra.mxu0 0.0
        %753 = vmatprep.subr.mxu0 0.0
        %754 = vmatpush1.msra.mxu0 0.0
        %755 = vmatprep.subr.mxu0 0.0
        %756 = vmatpush1.msra.mxu0 0.0
        %757 = vmatprep.subr.mxu0 0.0
        %758 = vmatpush1.msra.mxu0 0.0
        %759 = vmatprep.subr.mxu0 0.0
        %760 = vmatpush1.msra.mxu0 0.0
        %761 = vmatprep.subr.mxu0 0.0
        %762 = vmatpush1.msra.mxu0 0.0
        %763 = vmatprep.subr.mxu0 0.0
        %764 = vmatpush1.msra.mxu0 0.0
        %765 = vmatprep.subr.mxu0 0.0
        %766 = vmatpush1.msra.mxu0 0.0
        %767 = vmatprep.subr.mxu0 0.0
        %768 = vmatpush1.msra.mxu0 0.0
        %769 = vmatprep.subr.mxu0 0.0
        %770 = vmatpush1.msra.mxu0 0.0
        %771 = vmatprep.subr.mxu0 0.0
        %772 = vmatpush1.msra.mxu0 0.0
        %773 = vmatprep.subr.mxu0 0.0
        %774 = vmatpush1.msra.mxu0 0.0
        %775 = vmatprep.subr.mxu0 0.0
        %776 = vmatpush1.msra.mxu0 0.0
        %777 = vmatprep.subr.mxu0 0.0
        %778 = vmatpush1.msra.mxu0 0.0
        %779 = vmatprep.subr.mxu0 0.0
        %780 = vmatpush1.msra.mxu0 0.0
        %781 = vmatprep.mubr.f32.mxu0 0.0
        %782 = vmatmul.mubr.f32.gmra.mrb[0].mxu0 %v712
        %v783 = vpop.f32.mrb[0].mxu0
        %v784 = vadd.f32 0.0, %v783
        %v785 = vpop.f32.mrb[0].mxu0
        %786 = vmatprep.mubr.f32.mxu0 0.0
        %787 = vmatmul.mubr.f32.gmra.mrb[0].mxu0 %v715
        %v788 = vpop.f32.mrb[0].mxu0
        %v789 = vadd.f32 0.0, %v788
        %v790 = vpop.f32.mrb[0].mxu0
        %791 = vdwg.mxu0
        %v792 = vld [vmem:[%s498] sm:$0xff]
        %v793 = vld [vmem:[%s498 + $0x8] sm:$0xff]
        %v794 = vsub.f32 %v792, %v784
        %v795 = vsub.f32 %v793, %v789
        %v796 = vand.u32 2147483647, %v794
        %v797 = vand.u32 2147483647, %v795
        %vm798 = vcmask 64512
        %v799 = vsel %vm798, %v796, 0.0
        %v800 = vsel %vm798, %v797, 0.0
        %v801 = vadd.f32 %v799, %v800
        %802 = vadd.xlane.f32.xlu0 %v801
        %v803 = vpop.xlane.xlu0 %802
        %v804 = vrot.slane %v803, 4
        %v805 = vadd.f32 %v803, %v804
        %v806 = vrot.slane %v805, 2
        %v807 = vadd.f32 %v805, %v806
        %v808 = vrot.slane %v807, 1
        %v809 = vadd.f32 %v807, %v808
        %s810 = vtos %v809
        %s811 = smul.f32 %s810, 0.000625
        %812 = vst.msk [vmem:[#allocation2] sm:$0xff] %vm798, %v784
        %813 = vst.msk [vmem:[#allocation2 + $0x10] sm:$0xff] %vm798, %v789
        %v814 = vld [vmem:[#allocation2] ss:$2 sm:$0xf]
        %v815 = vld [vmem:[%s701] ss:$2 sm:$0xf]
        %v816 = vld [vmem:[%s703] ss:$2 sm:$0xf]
        %v817 = vld [vmem:[%s705] ss:$2 sm:$0xf]
        %v818 = vadd.f32 %v814, %v816
        %v819 = vadd.f32 %v815, %v817
        %v820 = vld [vmem:[%s8] sm:$0xff]
        %v823 = vcombine.low %v818, %v819
        %v824 = vsel %vm798, %v823, 0
        %826 = vmatprep.subr.mxu0 0.0
        %827 = vmatpush1.msra.mxu0 %v820
        %828 = vmatprep.subr.mxu0 0.0
        %829 = vmatpush1.msra.mxu0 0.0
        %830 = vmatprep.subr.mxu0 0.0
        %831 = vmatpush1.msra.mxu0 0.0
        %832 = vmatprep.subr.mxu0 0.0
        %833 = vmatpush1.msra.mxu0 0.0
        %834 = vmatprep.subr.mxu0 0.0
        %835 = vmatpush1.msra.mxu0 0.0
        %836 = vmatprep.subr.mxu0 0.0
        %837 = vmatpush1.msra.mxu0 0.0
        %838 = vmatprep.subr.mxu0 0.0
        %839 = vmatpush1.msra.mxu0 0.0
        %840 = vmatprep.subr.mxu0 0.0
        %841 = vmatpush1.msra.mxu0 0.0
        %842 = vmatprep.subr.mxu0 0.0
        %843 = vmatpush1.msra.mxu0 0.0
        %844 = vmatprep.subr.mxu0 0.0
        %845 = vmatpush1.msra.mxu0 0.0
        %846 = vmatprep.subr.mxu0 0.0
        %847 = vmatpush1.msra.mxu0 0.0
        %848 = vmatprep.subr.mxu0 0.0
        %849 = vmatpush1.msra.mxu0 0.0
        %850 = vmatprep.subr.mxu0 0.0
        %851 = vmatpush1.msra.mxu0 0.0
        %852 = vmatprep.subr.mxu0 0.0
        %853 = vmatpush1.msra.mxu0 0.0
        %854 = vmatprep.subr.mxu0 0.0
        %855 = vmatpush1.msra.mxu0 0.0
        %856 = vmatprep.subr.mxu0 0.0
        %857 = vmatpush1.msra.mxu0 0.0
        %858 = vmatprep.subr.mxu0 0.0
        %859 = vmatpush1.msra.mxu0 0.0
        %860 = vmatprep.subr.mxu0 0.0
        %861 = vmatpush1.msra.mxu0 0.0
        %862 = vmatprep.subr.mxu0 0.0
        %863 = vmatpush1.msra.mxu0 0.0
        %864 = vmatprep.subr.mxu0 0.0
        %865 = vmatpush1.msra.mxu0 0.0
        %866 = vmatprep.subr.mxu0 0.0
        %867 = vmatpush1.msra.mxu0 0.0
        %868 = vmatprep.subr.mxu0 0.0
        %869 = vmatpush1.msra.mxu0 0.0
        %870 = vmatprep.subr.mxu0 0.0
        %871 = vmatpush1.msra.mxu0 0.0
        %872 = vmatprep.subr.mxu0 0.0
        %873 = vmatpush1.msra.mxu0 0.0
        %874 = vmatprep.subr.mxu0 0.0
        %875 = vmatpush1.msra.mxu0 0.0
        %876 = vmatprep.subr.mxu0 0.0
        %877 = vmatpush1.msra.mxu0 0.0
        %878 = vmatprep.subr.mxu0 0.0
        %879 = vmatpush1.msra.mxu0 0.0
        %880 = vmatprep.subr.mxu0 0.0
        %881 = vmatpush1.msra.mxu0 0.0
        %882 = vmatprep.subr.mxu0 0.0
        %883 = vmatpush1.msra.mxu0 0.0
        %884 = vmatprep.subr.mxu0 0.0
        %885 = vmatpush1.msra.mxu0 0.0
        %886 = vmatprep.subr.mxu0 0.0
        %887 = vmatpush1.msra.mxu0 0.0
        %888 = vmatprep.subr.mxu0 0.0
        %889 = vmatpush1.msra.mxu0 0.0
        %890 = vmatprep.mubr.f32.mxu0 0.0
        %891 = vmatmul.mubr.f32.gmra.mrb[0].mxu0 %v824
        %v892 = vpop.f32.mrb[0].mxu0
        %v893 = vadd.f32 0.0, %v892
        %v894 = vpop.f32.mrb[0].mxu0
        %895 = vdwg.mxu0
        %v897 = vcombine.high %v893, %v893
        %v899 = vld [vmem:[%s504] sm:$0xf]
        %v900 = vld [vmem:[%s504 + $0x4] sm:$0xf]
        %v901 = vsub.f32 %v899, %v893
        %v902 = vsub.f32 %v900, %v897
        %v903 = vand.u32 2147483647, %v901
        %v904 = vand.u32 2147483647, %v902
        %vm905 = vcmask 27648
        %v906 = vsel %vm905, %v903, 0.0
        %v907 = vsel %vm905, %v904, 0.0
        %v908 = vadd.f32 %v906, %v907
        %909 = vadd.xlane.f32.xlu0 %v908
        %v910 = vpop.xlane.xlu0 %909
        %v911 = vrot.slane %v910, 4
        %v912 = vadd.f32 %v910, %v911
        %v913 = vrot.slane %v912, 2
        %v914 = vadd.f32 %v912, %v913
        %v915 = vrot.slane %v914, 1
        %v916 = vadd.f32 %v914, %v915
        %s917 = vtos %v916
        %s918 = smul.f32 %s917, 0.00125
        %919 = vst.msk [vmem:[#allocation2] sm:$0xf] %vm905, %v893
        %920 = vst.msk [vmem:[#allocation2 + $0x10] sm:$0xf] %vm905, %v897
        %v921 = vld [vmem:[#allocation2] ss:$2 sm:$0x3]
        %v922 = vld [vmem:[%s701] ss:$2 sm:$0x3]
        %v923 = vld [vmem:[%s703] ss:$2 sm:$0x3]
        %v924 = vld [vmem:[%s705] ss:$2 sm:$0x3]
        %v925 = vadd.f32 %v921, %v923
        %v926 = vadd.f32 %v922, %v924
        %v927 = vld [vmem:[%s9] sm:$0xf]
        %v930 = vcombine.low %v925, %v926
        %v932 = vunpack.c.l.s4 1983009808
        %v933 = vunpack.c.0.s8 %v932
        %v934 = vlaneseq
        %v935 = vshrl.u32 %v934, 7
        %v936 = vsub.s32 %v933, %v935
        %v937 = vrot.slane %v930, %v936
        %vm938 = vcmask 31744
        %v939 = vsel %vm938, %v937, 0
        %vm941 = vcmask 1043456
        %v943 = vsel %vm941, %v927, 0
        %945 = vmatprep.subr.mxu0 0.0
        %946 = vmatpush1.msra.mxu0 %v943
        %947 = vmatprep.subr.mxu0 0.0
        %948 = vmatpush1.msra.mxu0 0.0
        %949 = vmatprep.subr.mxu0 0.0
        %950 = vmatpush1.msra.mxu0 0.0
        %951 = vmatprep.subr.mxu0 0.0
        %952 = vmatpush1.msra.mxu0 0.0
        %953 = vmatprep.subr.mxu0 0.0
        %954 = vmatpush1.msra.mxu0 0.0
        %955 = vmatprep.subr.mxu0 0.0
        %956 = vmatpush1.msra.mxu0 0.0
        %957 = vmatprep.subr.mxu0 0.0
        %958 = vmatpush1.msra.mxu0 0.0
        %959 = vmatprep.subr.mxu0 0.0
        %960 = vmatpush1.msra.mxu0 0.0
        %961 = vmatprep.subr.mxu0 0.0
        %962 = vmatpush1.msra.mxu0 0.0
        %963 = vmatprep.subr.mxu0 0.0
        %964 = vmatpush1.msra.mxu0 0.0
        %965 = vmatprep.subr.mxu0 0.0
        %966 = vmatpush1.msra.mxu0 0.0
        %967 = vmatprep.subr.mxu0 0.0
        %968 = vmatpush1.msra.mxu0 0.0
        %969 = vmatprep.subr.mxu0 0.0
        %970 = vmatpush1.msra.mxu0 0.0
        %971 = vmatprep.subr.mxu0 0.0
        %972 = vmatpush1.msra.mxu0 0.0
        %973 = vmatprep.subr.mxu0 0.0
        %974 = vmatpush1.msra.mxu0 0.0
        %975 = vmatprep.subr.mxu0 0.0
        %976 = vmatpush1.msra.mxu0 0.0
        %977 = vmatprep.subr.mxu0 0.0
        %978 = vmatpush1.msra.mxu0 0.0
        %979 = vmatprep.subr.mxu0 0.0
        %980 = vmatpush1.msra.mxu0 0.0
        %981 = vmatprep.subr.mxu0 0.0
        %982 = vmatpush1.msra.mxu0 0.0
        %983 = vmatprep.subr.mxu0 0.0
        %984 = vmatpush1.msra.mxu0 0.0
        %985 = vmatprep.subr.mxu0 0.0
        %986 = vmatpush1.msra.mxu0 0.0
        %987 = vmatprep.subr.mxu0 0.0
        %988 = vmatpush1.msra.mxu0 0.0
        %989 = vmatprep.subr.mxu0 0.0
        %990 = vmatpush1.msra.mxu0 0.0
        %991 = vmatprep.subr.mxu0 0.0
        %992 = vmatpush1.msra.mxu0 0.0
        %993 = vmatprep.subr.mxu0 0.0
        %994 = vmatpush1.msra.mxu0 0.0
        %995 = vmatprep.subr.mxu0 0.0
        %996 = vmatpush1.msra.mxu0 0.0
        %997 = vmatprep.subr.mxu0 0.0
        %998 = vmatpush1.msra.mxu0 0.0
        %999 = vmatprep.subr.mxu0 0.0
        %1000 = vmatpush1.msra.mxu0 0.0
        %1001 = vmatprep.subr.mxu0 0.0
        %1002 = vmatpush1.msra.mxu0 0.0
        %1003 = vmatprep.subr.mxu0 0.0
        %1004 = vmatpush1.msra.mxu0 0.0
        %1005 = vmatprep.subr.mxu0 0.0
        %1006 = vmatpush1.msra.mxu0 0.0
        %1007 = vmatprep.subr.mxu0 0.0
        %1008 = vmatpush1.msra.mxu0 0.0
        %1009 = vmatprep.mubr.f32.mxu0 0.0
        %1010 = vmatmul.mubr.f32.gmra.mrb[0].mxu0 %v939
        %v1011 = vpop.f32.mrb[0].mxu0
        %v1012 = vadd.f32 0.0, %v1011
        %v1013 = vpop.f32.mrb[0].mxu0
        %1014 = vdwg.mxu0
        %v1017 = vunpack.c.l.s4 1983009808
        %v1018 = vunpack.c.0.s8 %v1017
        %v1019 = vlaneseq
        %v1020 = vshrl.u32 %v1019, 7
        %v1021 = vsub.s32 %v1018, %v1020
        %v1022 = vrot.slane %v1012, %v1021
        %v1023 = vcombine.high %v1022, %v1022
        %v1026 = vld [vmem:[%s510] sm:$0x3]
        %v1027 = vld [vmem:[%s510 + $0x2] sm:$0x3]
        %v1028 = vsub.f32 %v1026, %v1022
        %v1029 = vsub.f32 %v1027, %v1023
        %v1030 = vand.u32 2147483647, %v1028
        %v1031 = vand.u32 2147483647, %v1029
        %vm1032 = vcmask 9216
        %v1033 = vsel %vm1032, %v1030, 0.0
        %v1034 = vsel %vm1032, %v1031, 0.0
        %v1035 = vadd.f32 %v1033, %v1034
        %1036 = vadd.xlane.f32.xlu0 %v1035
        %v1037 = vpop.xlane.xlu0 %1036
        %v1038 = vrot.slane %v1037, 4
        %v1039 = vadd.f32 %v1037, %v1038
        %v1040 = vrot.slane %v1039, 2
        %v1041 = vadd.f32 %v1039, %v1040
        %v1042 = vrot.slane %v1041, 1
        %v1043 = vadd.f32 %v1041, %v1042
        %s1044 = vtos %v1043
        %s1045 = smul.f32 %s1044, 0.0025
        %1046 = vst.msk [vmem:[#allocation2] sm:$0x3] %vm1032, %v1022
        %1047 = vst.msk [vmem:[#allocation2 + $0x10] sm:$0x3] %vm1032, %v1023
        %v1048 = vld [vmem:[#allocation2] ss:$2 sm:$0x1]
        %v1049 = vld [vmem:[%s701] ss:$2 sm:$0x1]
        %v1050 = vld [vmem:[%s703] ss:$2 sm:$0x1]
        %v1051 = vld [vmem:[%s705] ss:$2 sm:$0x1]
        %v1052 = vadd.f32 %v1048, %v1050
        %v1053 = vadd.f32 %v1049, %v1051
        %v1054 = vld [vmem:[%s10] sm:$0x3]
        %v1057 = vrot.slane %v1053, 7
        %vm1058 = vcmask 1041409
        %v1059 = vsel %vm1058, %v1057, %v1052
        %vm1060 = vcmask 15360
        %v1061 = vsel %vm1060, %v1059, 0
        %vm1063 = vcmask 1041408
        %v1065 = vsel %vm1063, %v1054, 0
        %1067 = vmatprep.subr.mxu0 0.0
        %1068 = vmatpush1.msra.mxu0 %v1065
        %1069 = vmatprep.subr.mxu0 0.0
        %1070 = vmatpush1.msra.mxu0 0.0
        %1071 = vmatprep.subr.mxu0 0.0
        %1072 = vmatpush1.msra.mxu0 0.0
        %1073 = vmatprep.subr.mxu0 0.0
        %1074 = vmatpush1.msra.mxu0 0.0
        %1075 = vmatprep.subr.mxu0 0.0
        %1076 = vmatpush1.msra.mxu0 0.0
        %1077 = vmatprep.subr.mxu0 0.0
        %1078 = vmatpush1.msra.mxu0 0.0
        %1079 = vmatprep.subr.mxu0 0.0
        %1080 = vmatpush1.msra.mxu0 0.0
        %1081 = vmatprep.subr.mxu0 0.0
        %1082 = vmatpush1.msra.mxu0 0.0
        %1083 = vmatprep.subr.mxu0 0.0
        %1084 = vmatpush1.msra.mxu0 0.0
        %1085 = vmatprep.subr.mxu0 0.0
        %1086 = vmatpush1.msra.mxu0 0.0
        %1087 = vmatprep.subr.mxu0 0.0
        %1088 = vmatpush1.msra.mxu0 0.0
        %1089 = vmatprep.subr.mxu0 0.0
        %1090 = vmatpush1.msra.mxu0 0.0
        %1091 = vmatprep.subr.mxu0 0.0
        %1092 = vmatpush1.msra.mxu0 0.0
        %1093 = vmatprep.subr.mxu0 0.0
        %1094 = vmatpush1.msra.mxu0 0.0
        %1095 = vmatprep.subr.mxu0 0.0
        %1096 = vmatpush1.msra.mxu0 0.0
        %1097 = vmatprep.subr.mxu0 0.0
        %1098 = vmatpush1.msra.mxu0 0.0
        %1099 = vmatprep.subr.mxu0 0.0
        %1100 = vmatpush1.msra.mxu0 0.0
        %1101 = vmatprep.subr.mxu0 0.0
        %1102 = vmatpush1.msra.mxu0 0.0
        %1103 = vmatprep.subr.mxu0 0.0
        %1104 = vmatpush1.msra.mxu0 0.0
        %1105 = vmatprep.subr.mxu0 0.0
        %1106 = vmatpush1.msra.mxu0 0.0
        %1107 = vmatprep.subr.mxu0 0.0
        %1108 = vmatpush1.msra.mxu0 0.0
        %1109 = vmatprep.subr.mxu0 0.0
        %1110 = vmatpush1.msra.mxu0 0.0
        %1111 = vmatprep.subr.mxu0 0.0
        %1112 = vmatpush1.msra.mxu0 0.0
        %1113 = vmatprep.subr.mxu0 0.0
        %1114 = vmatpush1.msra.mxu0 0.0
        %1115 = vmatprep.subr.mxu0 0.0
        %1116 = vmatpush1.msra.mxu0 0.0
        %1117 = vmatprep.subr.mxu0 0.0
        %1118 = vmatpush1.msra.mxu0 0.0
        %1119 = vmatprep.subr.mxu0 0.0
        %1120 = vmatpush1.msra.mxu0 0.0
        %1121 = vmatprep.subr.mxu0 0.0
        %1122 = vmatpush1.msra.mxu0 0.0
        %1123 = vmatprep.subr.mxu0 0.0
        %1124 = vmatpush1.msra.mxu0 0.0
        %1125 = vmatprep.subr.mxu0 0.0
        %1126 = vmatpush1.msra.mxu0 0.0
        %1127 = vmatprep.subr.mxu0 0.0
        %1128 = vmatpush1.msra.mxu0 0.0
        %1129 = vmatprep.subr.mxu0 0.0
        %1130 = vmatpush1.msra.mxu0 0.0
        %1131 = vmatprep.mubr.f32.mxu0 0.0
        %1132 = vmatmul.mubr.f32.gmra.mrb[0].mxu0 %v1061
        %v1133 = vpop.f32.mrb[0].mxu0
        %v1134 = vadd.f32 0.0, %v1133
        %v1135 = vpop.f32.mrb[0].mxu0
        %1136 = vdwg.mxu0
        %v1139 = vunpack.c.l.s4 1966171168
        %v1140 = vunpack.c.0.s8 %v1139
        %v1141 = vlaneseq
        %v1142 = vshrl.u32 %v1141, 7
        %v1143 = vsub.s32 %v1140, %v1142
        %v1144 = vrot.slane %v1134, %v1143
        %v1145 = vcombine.high %v1144, %v1144
        %v1147 = vunpack.c.l.s4 1966171168
        %v1148 = vunpack.c.0.s8 %v1147
        %v1149 = vlaneseq
        %v1150 = vshrl.u32 %v1149, 7
        %v1151 = vsub.s32 %v1148, %v1150
        %v1152 = vrot.slane %v1144, %v1151
        %v1154 = vunpack.c.l.s4 1966171168
        %v1155 = vunpack.c.0.s8 %v1154
        %v1156 = vlaneseq
        %v1157 = vshrl.u32 %v1156, 7
        %v1158 = vsub.s32 %v1155, %v1157
        %v1159 = vrot.slane %v1145, %v1158
        %v1162 = vld [vmem:[%s515] sm:$0x1]
        %v1163 = vld [vmem:[%s515 + $0x1] sm:$0x1]
        %v1164 = vsub.f32 %v1162, %v1152
        %v1165 = vsub.f32 %v1163, %v1159
        %v1166 = vand.u32 2147483647, %v1164
        %v1167 = vand.u32 2147483647, %v1165
        %vm1168 = vcmask 0
        %v1169 = vsel %vm1168, %v1166, 0.0
        %v1170 = vsel %vm1168, %v1167, 0.0
        %v1171 = vadd.f32 %v1169, %v1170
        %1172 = vadd.xlane.f32.xlu0 %v1171
        %v1173 = vpop.xlane.xlu0 %1172
        %v1174 = vrot.slane %v1173, 4
        %v1175 = vadd.f32 %v1173, %v1174
        %v1176 = vrot.slane %v1175, 2
        %v1177 = vadd.f32 %v1175, %v1176
        %v1178 = vrot.slane %v1177, 1
        %v1179 = vadd.f32 %v1177, %v1178
        %s1180 = vtos %v1179
        %s1181 = smul.f32 %s1180, 0.005
        %s1182 = sadd.f32 %s695, %s811
        %s1183 = sadd.f32 %s1182, %s918
        %s1184 = sadd.f32 %s1183, %s1045
        %s1185 = sadd.f32 %s1184, %s1181
        %v1186 = vlaneseq
        %v1187 = vshrl.u32 %v1186, 7
        %v1188 = vlaneseq
        %v1189 = vand.u32 %v1188, 127
        %vm1190 = vcmp.eq.s32.totalorder %v1187, 0
        %vm1191 = vcmp.eq.s32.totalorder %v1189, 0
        %vm1192 = vmand %vm1190, %vm1191
        %v1193 = vstv %s1185
        %v1194 = vsel %vm1192, %v1193, 0.0
        %1195 = vst [vmem:[%s485] sm:$0xff] %v1194
        %s1196 = sand.u32 %s297, 1
        %s1197 = scalar_lea.sflag [#allocation5], %s1196
        %s1198 = sand.u32 %s297, 1
        %s1199 = smul.addr %s1198, 8
        %s1200 = scalar_lea.vmem [#allocation6], %s1199
        // Predicated region
        $region69: #{tpu_custom_call.1} parent=63 // pred_check
          %p1201 = pneg %p307
        $region70: #{tpu_custom_call.1} parent=63 // pred_check_branch
          %1203 = sbr.rel (%p1201) target = $region72
        $region71: #{tpu_custom_call.1} parent=63 // pred_region
          %s1205 = ssub.s32 128, 128
          %1206 = vsyncadd %s1197, %s1205
          %s1207 = smul.addr %s28, 128
          %s1208 = scalar_lea.hbm %s11, %s1207
          %s1210 = sshll.u32 %s1200, 4
          %s1211 = int_to_ptr.vmem [resolvable:$true] %s1210
          %1213 = dma.vmem_to_hbm [thread:$0]  %s1211, 128, %s1208, %s1197
        $region72: #{tpu_custom_call.1} parent=63 // pred_fallthru
          _
      $region64: #{tpu_custom_call.1} parent=5 // pred_fallthru
        _
      %p1214 = scmp.le.s32.totalorder 2, %s23
      // Predicated region
      $region73: #{tpu_custom_call.1} parent=5 // pred_check
        %p1215 = pneg %p1214
      $region74: #{tpu_custom_call.1} parent=5 // pred_check_branch
        %1217 = sbr.rel (%p1215) target = $region76
      $region75: #{tpu_custom_call.1} parent=5 // pred_region
        %s1218 = ssub.s32 %s23, 2
        // Predicated region
        $region77: #{tpu_custom_call.1} parent=75 // pred_check
          %p1219 = pneg %p313
        $region78: #{tpu_custom_call.1} parent=75 // pred_check_branch
          %1221 = sbr.rel (%p1219) target = $region80
        $region79: #{tpu_custom_call.1} parent=75 // pred_region
          %s1222 = sand.u32 %s298, 1
          %s1223 = scalar_lea.sflag [#allocation5], %s1222
          %s1224 = sand.u32 %s298, 1
          %s1225 = smul.addr %s1224, 8
          %s1226 = scalar_lea.vmem [#allocation6], %s1225
          %1227 = dma.done %s1223, 128
        $region80: #{tpu_custom_call.1} parent=75 // pred_fallthru
          _
      $region76: #{tpu_custom_call.1} parent=5 // pred_fallthru
        _
    $region6: #{tpu_custom_call.1} parent=1 // loop_footer
      %s27 = sadd.s32 1, %s23
    $region7: #{tpu_custom_call.1} parent=1 // loop_footer_branch
      %22 = sbr.rel target = $region3
    $region8: #{tpu_custom_call.1} parent=1 // loop_exit
      _
    %1228 = vsyncpa [#allocation4], 1
    %s1229 = scalar_lea.sflag [#allocation4], 1
    %1230 = vsyncpa %s1229, 1
    %1231 = vsyncpa [#allocation5], 1
    %s1232 = scalar_lea.sflag [#allocation5], 1
    %1233 = vsyncpa %s1232, 1

</llo_original>
